<compile_context>
chip_gen: v6e
topology: v6e:2x2x1
jax: 0.10.0
libtpu: 0.0.40
codegen_flags: <defaults>
</compile_context>

<pallas_src>
import math
import functools

import jax
import jax.numpy as jnp
from jax.experimental import pallas as pl
from jax.experimental.pallas import tpu as pltpu


# ----------------------------------------------------------------------------
# Kernel
# ----------------------------------------------------------------------------
def _self_attention_kernel(x_ref, amask_ref, vmask_ref,
                           wqkv_ref, bqkv_ref, wd_ref, bd_ref,
                           out_ref, *probs_refs,
                           layer_norm_eps, h_true, mask_mode):
    bt, s, hp = x_ref.shape

    # Fused QKV projection: one tall (bt*S, Hp) x (Hp, 3*Hp) bf16 matmul.
    x_bf = x_ref[...].reshape(bt * s, hp).astype(jnp.bfloat16)
    qkv = (jnp.dot(x_bf, wqkv_ref[...], preferred_element_type=jnp.float32)
           + bqkv_ref[...])                                   # [bt*S, 3*Hp] f32

    # Lane-aligned slices (Hp is a multiple of 128).  Scale is pre-folded
    # into the Q weights/bias in the wrapper.
    q = qkv[:, :hp].reshape(bt, s, hp).astype(jnp.bfloat16)
    k = qkv[:, hp:2 * hp].reshape(bt, s, hp).astype(jnp.bfloat16)
    v = qkv[:, 2 * hp:].reshape(bt, s, hp).astype(jnp.bfloat16)

    # Scaled attention scores via contracting-dim einsum (no explicit k.T).
    scores = jnp.einsum("bqh,bkh->bqk", q, k,
                        preferred_element_type=jnp.float32)   # [bt,S,S] f32

    if mask_mode != "none":
        # dense: [bt,S,S]; key: [bt,1,S] broadcast over the query axis.
        scores = scores + amask_ref[...].astype(jnp.float32)

    # Numerically stable softmax.  Exact divide: attention_probs is a
    # user-visible output, rows must sum to 1 (no approximate reciprocal).
    scores = scores - jnp.max(scores, axis=-1, keepdims=True)
    e = jnp.exp(scores)
    probs = e / jnp.sum(e, axis=-1, keepdims=True)

    # Context + output projection.
    ctx = jnp.einsum("bqk,bkh->bqh", probs.astype(jnp.bfloat16), v,
                     preferred_element_type=jnp.float32)      # [bt,S,Hp] f32
    h = (jnp.dot(ctx.reshape(bt * s, hp).astype(jnp.bfloat16), wd_ref[...],
                 preferred_element_type=jnp.float32)
         + bd_ref[...]).reshape(bt, s, hp)

    # Multiplicative value mask, broadcast from [bt,S,1] inside the kernel.
    h = h * vmask_ref[...].astype(jnp.float32)

    if layer_norm_eps is not None:
        # Residual + LayerNorm.  Re-read x from VMEM (no f32 copy kept live
        # across the whole kernel).  Padded columns of (h + x) are zero, so
        # the mean is correct when divided by the true hidden size; the
        # centered term is masked so the E[(x-mu)^2] variance is also exact.
        r = h + x_ref[...].astype(jnp.float32)
        inv_h = jnp.float32(1.0 / h_true)
        mu = jnp.sum(r, axis=-1, keepdims=True) * inv_h
        d = r - mu
        if hp != h_true:
            lane = jax.lax.broadcasted_iota(jnp.int32, r.shape, r.ndim - 1)
            d = jnp.where(lane < h_true, d, jnp.float32(0.0))
        var = jnp.sum(d * d, axis=-1, keepdims=True) * inv_h
        h = (r - mu) * jax.lax.rsqrt(var + jnp.float32(layer_norm_eps))
        # TODO(synk): LayerNorm affine (gamma/beta) omitted; matches a
        # default-initialized nn.LayerNorm (gamma=1, beta=0) only.

    out_ref[...] = h.astype(out_ref.dtype)
    if probs_refs:
        # TODO(synk): for S < 128 the probs store is lane-sparse (masked vst);
        # pad/reshape to 128 lanes only if the store epilogue dominates.
        probs_refs[0][...] = probs.astype(probs_refs[0].dtype)


# ----------------------------------------------------------------------------
# Wrapper helpers
# ----------------------------------------------------------------------------
def _round_up(x, m):
    return (x + m - 1) // m * m


def _padded_bytes(shape, itemsize=4):
    r = _round_up(shape[-2], 8) if len(shape) >= 2 else 1
    c = _round_up(shape[-1], 128)
    lead = 1
    for d in shape[:-2]:
        lead *= d
    return lead * r * c * itemsize


def _vmem_capacity_bytes():
    cap = 64 << 20   # conservative default = v7x per-TensorCore VMEM
    try:
        info = pltpu.get_tpu_info()
        cap = int(getattr(info, "vmem_capacity_bytes", cap))
    except Exception:
        pass
    return cap


def _pick_batch_tile(B, S, Hp, block_budget):
    """Largest divisor of B that fits the budget; keeps >=2 grid steps so both
    v7x TensorCores get work (harmless on single-TC v5e/v6e)."""
    max_bt = max(1, B // 2) if B >= 2 else 1
    best = 1
    for d in range(1, max_bt + 1):
        if B % d != 0:
            continue
        rows = d * S
        approx = rows * (8 * Hp + 6 * max(S, 128)) * 4   # rough live f32 bytes
        if d > 1 and approx > block_budget:
            break
        best = d
    return best


# ----------------------------------------------------------------------------
# Wrapper
# ----------------------------------------------------------------------------
def self_attention(x, attention_mask, value_attention_mask, params, *,
                   n_heads=1, layer_norm_eps=None, presci_adj_matrix=None,
                   probs_dtype=jnp.bfloat16, return_probs=True):
    """x: [B, S, H] f32.
    attention_mask: None, [B, S] (additive key mask, broadcast over queries),
                    or dense [B, S, S] (module form).
    value_attention_mask: None, [B, S] / [B, S, 1] (broadcast in-kernel), or [B, S, H].
    params: PyTorch-layout Linear weights {q_w,k_w,v_w,d_w: [out,in]; *_b: [out]}.
    Returns (hidden_states [B,S,H], attention_probs [B,S,S]) or just hidden_states
    when return_probs=False."""
    B, S, H = x.shape
    if H % n_heads != 0:
        raise ValueError("hidden size not a multiple of n_heads")
    head_size = H // n_heads
    scale = 1.0 / math.sqrt(head_size)

    # --- pad hidden dim to a multiple of 128 lanes (zero padding is exact) ---
    Hp = _round_up(H, 128)
    x_p = jnp.pad(x, ((0, 0), (0, 0), (0, Hp - H))) if Hp != H else x

    def pad_wt(w):   # PyTorch [out,in] -> padded, transposed [Hp,Hp] f32
        wt = jnp.asarray(w, jnp.float32).T
        if Hp != H:
            wt = jnp.pad(wt, ((0, Hp - H), (0, Hp - H)))
        return wt

    def pad_b(b):
        bb = jnp.asarray(b, jnp.float32).reshape(1, H)
        if Hp != H:
            bb = jnp.pad(bb, ((0, 0), (0, Hp - H)))
        return bb

    # Fold 1/sqrt(head_size) into the Q projection, then fuse Q|K|V.
    wq = pad_wt(params["q_w"]) * scale
    bq = pad_b(params["q_b"]) * scale
    wk, bk = pad_wt(params["k_w"]), pad_b(params["k_b"])
    wv, bv = pad_wt(params["v_w"]), pad_b(params["v_b"])
    w_qkv = jnp.concatenate([wq, wk, wv], axis=1).astype(jnp.bfloat16)  # [Hp,3Hp]
    b_qkv = jnp.concatenate([bq, bk, bv], axis=1)                       # [1,3Hp] f32
    wd = pad_wt(params["d_w"]).astype(jnp.bfloat16)                     # [Hp,Hp]
    bd = pad_b(params["d_b"])                                           # [1,Hp] f32

    # --- attention mask: keep it skinny when possible ---
    if presci_adj_matrix is not None:
        dense = jnp.asarray(presci_adj_matrix, jnp.float32)
        if attention_mask is not None:
            am = jnp.asarray(attention_mask, jnp.float32)
            if am.ndim == 2:
                am = am[:, None, :]
            dense = dense + am
        amask = jnp.broadcast_to(dense, (B, S, S)).astype(jnp.float32)
        mask_mode = "dense"
    elif attention_mask is None:
        amask = jnp.zeros((B, 1, 1), jnp.float32)
        mask_mode = "none"
    elif attention_mask.ndim == 2:
        amask = jnp.asarray(attention_mask, jnp.float32).reshape(B, 1, S)
        mask_mode = "key"
    else:
        amask = jnp.asarray(attention_mask, jnp.float32)
        mask_mode = "dense"

    # --- value mask: pass un-broadcast, broadcast in-kernel ---
    vmask = value_attention_mask
    if vmask is None:
        vmask = jnp.ones((B, 1, 1), jnp.float32)
    else:
        vmask = jnp.asarray(vmask, jnp.float32)
        if vmask.ndim == 2:
            vmask = vmask[:, :, None]
        if vmask.shape[-1] == H and Hp != H:
            vmask = jnp.pad(vmask, ((0, 0), (0, 0), (0, Hp - H)))

    # --- generation-aware tiling / VMEM budget ---
    vmem_cap = _vmem_capacity_bytes()          # 64 MiB on v7x, 128 MiB on v5e/v6e
    block_budget = max(4 << 20, vmem_cap // 4)
    bt = _pick_batch_tile(B, S, Hp, block_budget) if S % 8 == 0 else 1
    grid = (B // bt,)

    probs_itemsize = jnp.dtype(probs_dtype).itemsize
    io_bytes = (2 * _padded_bytes((bt, S, Hp))
                + _padded_bytes((bt,) + tuple(amask.shape[1:]))
                + _padded_bytes((bt,) + tuple(vmask.shape[1:])))
    if return_probs:
        io_bytes += _padded_bytes((bt, S, S), probs_itemsize)
    w_bytes = (_padded_bytes((Hp, 3 * Hp), 2) + _padded_bytes((Hp, Hp), 2)
               + _padded_bytes((1, 3 * Hp)) + _padded_bytes((1, Hp)))
    scratch = 8 * _padded_bytes((bt, S, Hp)) + 5 * _padded_bytes((bt, S, S))
    est = 2 * io_bytes + w_bytes + scratch + (4 << 20)
    vmem_limit = int(min(max(est, 32 << 20), int(0.8 * vmem_cap)))

    kernel = functools.partial(_self_attention_kernel,
                               layer_norm_eps=layer_norm_eps,
                               h_true=H, mask_mode=mask_mode)

    def run(buffer_weights):
        def wspec(shape):
            idx = lambda b: tuple(0 for _ in shape)
            if buffer_weights:
                # Constant index_map -> never re-DMA'd; single buffer saves VMEM.
                return pl.BlockSpec(shape, idx, pipeline_mode=pl.Buffered(1))
            return pl.BlockSpec(shape, idx)

        in_specs = [
            pl.BlockSpec((bt, S, Hp), lambda b: (b, 0, 0)),                     # x
            pl.BlockSpec((bt,) + tuple(amask.shape[1:]), lambda b: (b, 0, 0)),  # attn mask
            pl.BlockSpec((bt,) + tuple(vmask.shape[1:]), lambda b: (b, 0, 0)),  # value mask
            wspec((Hp, 3 * Hp)), wspec((1, 3 * Hp)),                            # Wqkv, bqkv
            wspec((Hp, Hp)), wspec((1, Hp)),                                    # Wd, bd
        ]
        out_specs = [pl.BlockSpec((bt, S, Hp), lambda b: (b, 0, 0))]            # lane-dense
        out_shapes = [jax.ShapeDtypeStruct((B, S, Hp), x.dtype)]
        if return_probs:
            out_specs.append(pl.BlockSpec((bt, S, S), lambda b: (b, 0, 0)))
            out_shapes.append(jax.ShapeDtypeStruct((B, S, S), probs_dtype))

        return pl.pallas_call(
            kernel,
            out_shape=tuple(out_shapes),
            grid_spec=pltpu.PrefetchScalarGridSpec(
                num_scalar_prefetch=0, grid=grid,
                in_specs=in_specs, out_specs=out_specs),
            compiler_params=pltpu.CompilerParams(
                dimension_semantics=("parallel",),
                vmem_limit_bytes=vmem_limit),
        )(x_p, amask, vmask, w_qkv, b_qkv, wd, bd)

    try:
        results = run(True)
    except Exception:
        # Installed JAX rejected pipeline_mode=pl.Buffered(1); fall back to the
        # default (double-buffered) weight specs.
        results = run(False)

    out_p = results[0]
    out = out_p[:, :, :H] if Hp != H else out_p
    if return_probs:
        return out, results[1]
    return out


# ----------------------------------------------------------------------------
# References
# ----------------------------------------------------------------------------
def _reference_f32(x, attention_mask, value_attention_mask, params,
                   *, n_heads=1, layer_norm_eps=None):
    """Pure-JAX f32 mirror of the PyTorch forward (dropout=0)."""
    H = x.shape[-1]
    head_size = H // n_heads
    q = x @ params["q_w"].T + params["q_b"]
    k = x @ params["k_w"].T + params["k_b"]
    v = x @ params["v_w"].T + params["v_b"]
    scores = jnp.einsum("bqh,bkh->bqk", q, k) / math.sqrt(head_size)
    if attention_mask is not None:
        am = attention_mask if attention_mask.ndim == 3 else attention_mask[:, None, :]
        scores = scores + am
    probs = jax.nn.softmax(scores, axis=-1)
    ctx = jnp.einsum("bqk,bkh->bqh", probs, v)
    h = ctx @ params["d_w"].T + params["d_b"]
    h = h * value_attention_mask
    if layer_norm_eps is not None:
        r = h + x
        mu = jnp.mean(r, axis=-1, keepdims=True)
        var = jnp.mean((r - mu) ** 2, axis=-1, keepdims=True)
        h = (r - mu) / jnp.sqrt(var + layer_norm_eps)
    return h, probs


def _reference_bf16(x, attention_mask, value_attention_mask, params,
                    *, n_heads=1, layer_norm_eps=None):
    """Mirrors the kernel's mixed precision (bf16 operands, f32 accumulation,
    scale folded into the Q weights before the bf16 cast)."""
    bf = jnp.bfloat16
    H = x.shape[-1]
    head_size = H // n_heads
    scale = 1.0 / math.sqrt(head_size)
    x_bf = x.astype(bf)

    def proj(wn, bn, s=1.0):
        w = (jnp.asarray(params[wn], jnp.float32).T * s).astype(bf)
        return (jnp.einsum("bsh,hk->bsk", x_bf, w,
                           preferred_element_type=jnp.float32)
                + jnp.asarray(params[bn], jnp.float32) * s)

    q = proj("q_w", "q_b", scale)
    k = proj("k_w", "k_b")
    v = proj("v_w", "v_b")
    scores = jnp.einsum("bqh,bkh->bqk", q.astype(bf), k.astype(bf),
                        preferred_element_type=jnp.float32)
    if attention_mask is not None:
        am = attention_mask if attention_mask.ndim == 3 else attention_mask[:, None, :]
        scores = scores + am
    scores = scores - jnp.max(scores, axis=-1, keepdims=True)
    e = jnp.exp(scores)
    probs = e / jnp.sum(e, axis=-1, keepdims=True)
    ctx = jnp.einsum("bqk,bkh->bqh", probs.astype(bf), v.astype(bf),
                     preferred_element_type=jnp.float32)
    h = jnp.einsum("bsh,hk->bsk", ctx.astype(bf), params["d_w"].T.astype(bf),
                   preferred_element_type=jnp.float32) + params["d_b"]
    h = h * value_attention_mask
    if layer_norm_eps is not None:
        r = h + x
        mu = jnp.mean(r, axis=-1, keepdims=True)
        var = jnp.mean((r - mu) ** 2, axis=-1, keepdims=True)
        h = (r - mu) / jnp.sqrt(var + layer_norm_eps)
    return h, probs


# ----------------------------------------------------------------------------
# Demo / self-test
# ----------------------------------------------------------------------------
if __name__ == "__main__":
    B, S, H = 2, 8, 32
    key = jax.random.PRNGKey(0)
    ks = jax.random.split(key, 10)

    x = jax.random.normal(ks[0], (B, S, H), dtype=jnp.float32)

    # Additive attention mask: last 2 key positions masked out.
    valid = jnp.arange(S) < (S - 2)
    key_mask_row = jnp.where(valid, 0.0, -1e9).astype(jnp.float32)     # [S]
    attn_mask_key = jnp.broadcast_to(key_mask_row[None, :], (B, S))    # [B,S] skinny form
    attn_mask_dense = jnp.broadcast_to(key_mask_row[None, None, :],
                                       (B, S, S)).astype(jnp.float32)  # [B,S,S] module form

    # Multiplicative value mask [B,S,1] (NOT pre-broadcast to [B,S,H]).
    value_mask = jnp.broadcast_to(valid.astype(jnp.float32)[None, :, None], (B, S, 1))

    w_scale = 1.0 / math.sqrt(H)
    params = {
        "q_w": jax.random.uniform(ks[1], (H, H), jnp.float32, -w_scale, w_scale),
        "k_w": jax.random.uniform(ks[2], (H, H), jnp.float32, -w_scale, w_scale),
        "v_w": jax.random.uniform(ks[3], (H, H), jnp.float32, -w_scale, w_scale),
        "d_w": jax.random.uniform(ks[4], (H, H), jnp.float32, -w_scale, w_scale),
        "q_b": jax.random.uniform(ks[5], (H,), jnp.float32, -w_scale, w_scale),
        "k_b": jax.random.uniform(ks[6], (H,), jnp.float32, -w_scale, w_scale),
        "v_b": jax.random.uniform(ks[7], (H,), jnp.float32, -w_scale, w_scale),
        "d_b": jax.random.uniform(ks[8], (H,), jnp.float32, -w_scale, w_scale),
    }

    # Kernel: skinny key-mask path (probs written as bf16 by default).
    out, probs = self_attention(x, attn_mask_key, value_mask, params)
    out = jax.block_until_ready(out)
    probs = jax.block_until_ready(probs).astype(jnp.float32)

    # Kernel: dense-mask path (module interface) must agree.
    out_d, probs_d = self_attention(x, attn_mask_dense, value_mask, params)
    out_d = jax.block_until_ready(out_d)
    probs_d = probs_d.astype(jnp.float32)

    # Kernel: probs output skipped entirely.
    out_np = self_attention(x, attn_mask_key, value_mask, params, return_probs=False)
    out_np = jax.block_until_ready(out_np)

    ref_out, ref_probs = _reference_bf16(x, attn_mask_dense, value_mask, params)
    f32_out, f32_probs = _reference_f32(x, attn_mask_dense, value_mask, params)

    assert jnp.allclose(out, ref_out, atol=1e-2, rtol=1e-2), "hidden_states mismatch (bf16 mirror)"
    assert jnp.allclose(probs, ref_probs, atol=1e-2, rtol=1e-2), "attention_probs mismatch (bf16 mirror)"
    assert jnp.allclose(out, out_d, atol=1e-5, rtol=1e-5), "key-mask vs dense-mask path mismatch"
    assert jnp.allclose(probs, probs_d, atol=1e-5, rtol=1e-5), "key-mask vs dense-mask probs mismatch"
    assert jnp.allclose(out, out_np, atol=1e-6, rtol=1e-6), "return_probs=False path mismatch"
    assert jnp.allclose(out, f32_out, atol=3e-2, rtol=3e-2), "hidden_states drift vs f32 reference"
    assert jnp.allclose(probs, f32_probs, atol=3e-2, rtol=3e-2), "attention_probs drift vs f32 reference"

    # LayerNorm (residual) path — also exercises padded-H LayerNorm statistics.
    out_ln, _ = self_attention(x, attn_mask_key, value_mask, params, layer_norm_eps=1e-12)
    out_ln = jax.block_until_ready(out_ln)
    ref_ln, _ = _reference_bf16(x, attn_mask_dense, value_mask, params, layer_norm_eps=1e-12)
    assert jnp.allclose(out_ln, ref_ln, atol=1e-2, rtol=1e-2), "LayerNorm path mismatch"

    print("KERNEL_OK")
</pallas_src>

<mosaic_0001>
module attributes {stable_mosaic.version = 11 : i64} {
  func.func @_self_attention_kernel(%arg0: i32, %arg1: memref<1x8x128xf32, #tpu.memory_space<vmem>>, %arg2: memref<1x1x8xf32, #tpu.memory_space<vmem>>, %arg3: memref<1x8x1xf32, #tpu.memory_space<vmem>>, %arg4: memref<128x384xbf16, #tpu.memory_space<vmem>>, %arg5: memref<1x384xf32, #tpu.memory_space<vmem>>, %arg6: memref<128x128xbf16, #tpu.memory_space<vmem>>, %arg7: memref<1x128xf32, #tpu.memory_space<vmem>>, %arg8: memref<1x8x128xf32, #tpu.memory_space<vmem>>, %arg9: memref<1x8x8xbf16, #tpu.memory_space<vmem>>) attributes {dimension_semantics = [#tpu.dimension_semantics<parallel>], iteration_bounds = array<i64: 2>, scalar_prefetch = 0 : i64, scratch_operands = 0 : i64, tpu.core_type = #tpu.core_type<tc>, window_params = [{transform_indices = @transform_0, window_bounds = array<i64: 1, 8, 128>}, {transform_indices = @transform_1, window_bounds = array<i64: 1, 1, 8>}, {transform_indices = @transform_2, window_bounds = array<i64: 1, 8, 1>}, {pipeline_mode = #tpu.pipeline_mode<synchronous>, transform_indices = @transform_3, window_bounds = array<i64: 128, 384>}, {pipeline_mode = #tpu.pipeline_mode<synchronous>, transform_indices = @transform_4, window_bounds = array<i64: 1, 384>}, {pipeline_mode = #tpu.pipeline_mode<synchronous>, transform_indices = @transform_5, window_bounds = array<i64: 128, 128>}, {pipeline_mode = #tpu.pipeline_mode<synchronous>, transform_indices = @transform_6, window_bounds = array<i64: 1, 128>}, {transform_indices = @transform_7, window_bounds = array<i64: 1, 8, 128>}, {transform_indices = @transform_8, window_bounds = array<i64: 1, 8, 8>}]} {
    %c0 = arith.constant 0 : index
    %c0_0 = arith.constant 0 : index
    %c0_1 = arith.constant 0 : index
    %0 = vector.load %arg1[%c0, %c0_0, %c0_1] : memref<1x8x128xf32, #tpu.memory_space<vmem>>, vector<1x8x128xf32>
    %1 = vector.shape_cast %0 : vector<1x8x128xf32> to vector<8x128xf32>
    %2 = arith.truncf %1 : vector<8x128xf32> to vector<8x128xbf16>
    %c0_2 = arith.constant 0 : index
    %c0_3 = arith.constant 0 : index
    %3 = vector.load %arg4[%c0_2, %c0_3] : memref<128x384xbf16, #tpu.memory_space<vmem>>, vector<128x384xbf16>
    %cst = arith.constant dense<0.000000e+00> : vector<8x384xf32>
    %4 = tpu.matmul %2, %3, %cst {dimension_numbers = #tpu.dot_dimension_numbers<[1], [0], [0], [1], [0, 0, 1, 1], [], []>} : vector<8x128xbf16>, vector<128x384xbf16>, vector<8x384xf32> -> vector<8x384xf32>
    %c0_4 = arith.constant 0 : index
    %c0_5 = arith.constant 0 : index
    %5 = vector.load %arg5[%c0_4, %c0_5] : memref<1x384xf32, #tpu.memory_space<vmem>>, vector<1x384xf32>
    %6 = vector.broadcast %5 : vector<1x384xf32> to vector<8x384xf32>
    %7 = arith.addf %4, %6 : vector<8x384xf32>
    %8 = vector.extract_strided_slice %7 {offsets = [0, 0], sizes = [8, 128], strides = [1, 1]} : vector<8x384xf32> to vector<8x128xf32>
    %9 = vector.shape_cast %8 : vector<8x128xf32> to vector<1x8x128xf32>
    %10 = arith.truncf %9 : vector<1x8x128xf32> to vector<1x8x128xbf16>
    %11 = vector.extract_strided_slice %7 {offsets = [0, 128], sizes = [8, 128], strides = [1, 1]} : vector<8x384xf32> to vector<8x128xf32>
    %12 = vector.shape_cast %11 : vector<8x128xf32> to vector<1x8x128xf32>
    %13 = arith.truncf %12 : vector<1x8x128xf32> to vector<1x8x128xbf16>
    %14 = vector.extract_strided_slice %7 {offsets = [0, 256], sizes = [8, 128], strides = [1, 1]} : vector<8x384xf32> to vector<8x128xf32>
    %15 = vector.shape_cast %14 : vector<8x128xf32> to vector<1x8x128xf32>
    %16 = arith.truncf %15 : vector<1x8x128xf32> to vector<1x8x128xbf16>
    "tpu.trace_start"() <{level = 10 : i32, message = "bqh,bkh->bqk"}> : () -> ()
    %cst_6 = arith.constant dense<0.000000e+00> : vector<1x8x8xf32>
    %17 = tpu.matmul %10, %13, %cst_6 {dimension_numbers = #tpu.dot_dimension_numbers<[2], [2], [1], [1], [0, 0, 0, 1, 1, 1], [0], [0]>} : vector<1x8x128xbf16>, vector<1x8x128xbf16>, vector<1x8x8xf32> -> vector<1x8x8xf32>
    "tpu.trace_stop"() : () -> ()
    %c0_7 = arith.constant 0 : index
    %c0_8 = arith.constant 0 : index
    %c0_9 = arith.constant 0 : index
    %18 = vector.load %arg2[%c0_7, %c0_8, %c0_9] : memref<1x1x8xf32, #tpu.memory_space<vmem>>, vector<1x1x8xf32>
    %19 = vector.broadcast %18 : vector<1x1x8xf32> to vector<1x8x8xf32>
    %20 = arith.addf %17, %19 : vector<1x8x8xf32>
    %cst_10 = arith.constant dense<0xFF800000> : vector<1x8xf32>
    %21 = vector.multi_reduction <maximumf>, %20, %cst_10 [2] : vector<1x8x8xf32> to vector<1x8xf32>
    %22 = vector.shape_cast %21 : vector<1x8xf32> to vector<1x8x1xf32>
    %23 = vector.broadcast %22 : vector<1x8x1xf32> to vector<1x8x8xf32>
    %24 = arith.subf %20, %23 : vector<1x8x8xf32>
    %25 = math.exp %24 : vector<1x8x8xf32>
    %cst_11 = arith.constant dense<0.000000e+00> : vector<1x8xf32>
    %26 = vector.multi_reduction <add>, %25, %cst_11 [2] : vector<1x8x8xf32> to vector<1x8xf32>
    %27 = vector.shape_cast %26 : vector<1x8xf32> to vector<1x8x1xf32>
    %28 = vector.broadcast %27 : vector<1x8x1xf32> to vector<1x8x8xf32>
    %29 = arith.divf %25, %28 : vector<1x8x8xf32>
    %30 = arith.truncf %29 : vector<1x8x8xf32> to vector<1x8x8xbf16>
    "tpu.trace_start"() <{level = 10 : i32, message = "bqk,bkh->bqh"}> : () -> ()
    %cst_12 = arith.constant dense<0.000000e+00> : vector<1x8x128xf32>
    %31 = tpu.matmul %30, %16, %cst_12 {dimension_numbers = #tpu.dot_dimension_numbers<[2], [1], [1], [2], [0, 0, 0, 1, 1, 2], [0], [0]>} : vector<1x8x8xbf16>, vector<1x8x128xbf16>, vector<1x8x128xf32> -> vector<1x8x128xf32>
    "tpu.trace_stop"() : () -> ()
    %32 = vector.shape_cast %31 : vector<1x8x128xf32> to vector<8x128xf32>
    %33 = arith.truncf %32 : vector<8x128xf32> to vector<8x128xbf16>
    %c0_13 = arith.constant 0 : index
    %c0_14 = arith.constant 0 : index
    %34 = vector.load %arg6[%c0_13, %c0_14] : memref<128x128xbf16, #tpu.memory_space<vmem>>, vector<128x128xbf16>
    %cst_15 = arith.constant dense<0.000000e+00> : vector<8x128xf32>
    %35 = tpu.matmul %33, %34, %cst_15 {dimension_numbers = #tpu.dot_dimension_numbers<[1], [0], [0], [1], [0, 0, 1, 1], [], []>} : vector<8x128xbf16>, vector<128x128xbf16>, vector<8x128xf32> -> vector<8x128xf32>
    %c0_16 = arith.constant 0 : index
    %c0_17 = arith.constant 0 : index
    %36 = vector.load %arg7[%c0_16, %c0_17] : memref<1x128xf32, #tpu.memory_space<vmem>>, vector<1x128xf32>
    %37 = vector.broadcast %36 : vector<1x128xf32> to vector<8x128xf32>
    %38 = arith.addf %35, %37 : vector<8x128xf32>
    %39 = vector.shape_cast %38 : vector<8x128xf32> to vector<1x8x128xf32>
    %c0_18 = arith.constant 0 : index
    %c0_19 = arith.constant 0 : index
    %c0_20 = arith.constant 0 : index
    %40 = vector.load %arg3[%c0_18, %c0_19, %c0_20] : memref<1x8x1xf32, #tpu.memory_space<vmem>>, vector<1x8x1xf32>
    %41 = vector.broadcast %40 : vector<1x8x1xf32> to vector<1x8x128xf32>
    %42 = arith.mulf %39, %41 : vector<1x8x128xf32>
    %c0_21 = arith.constant 0 : index
    %c0_22 = arith.constant 0 : index
    %c0_23 = arith.constant 0 : index
    %43 = vector.load %arg8[%c0_21, %c0_22, %c0_23] : memref<1x8x128xf32, #tpu.memory_space<vmem>>, vector<1x8x128xf32>
    tpu.vector_store %arg8[%c0_21, %c0_22, %c0_23], %42 {strides = array<i32>} : memref<1x8x128xf32, #tpu.memory_space<vmem>>, vector<1x8x128xf32>,
    %44 = arith.truncf %29 : vector<1x8x8xf32> to vector<1x8x8xbf16>
    %c0_24 = arith.constant 0 : index
    %c0_25 = arith.constant 0 : index
    %c0_26 = arith.constant 0 : index
    %45 = vector.load %arg9[%c0_24, %c0_25, %c0_26] : memref<1x8x8xbf16, #tpu.memory_space<vmem>>, vector<1x8x8xbf16>
    tpu.vector_store %arg9[%c0_24, %c0_25, %c0_26], %44 {strides = array<i32>} : memref<1x8x8xbf16, #tpu.memory_space<vmem>>, vector<1x8x8xbf16>,
    return
  }
  func.func @transform_0(%arg0: i32) -> (i32, i32, i32) {
    %c0_i32 = arith.constant 0 : i32
    %c0_i32_0 = arith.constant 0 : i32
    %c0_i32_1 = arith.constant 0 : i32
    return %arg0, %c0_i32, %c0_i32_0 : i32, i32, i32
  }
  func.func @transform_1(%arg0: i32) -> (i32, i32, i32) {
    %c0_i32 = arith.constant 0 : i32
    %c0_i32_0 = arith.constant 0 : i32
    %c0_i32_1 = arith.constant 0 : i32
    return %arg0, %c0_i32, %c0_i32_0 : i32, i32, i32
  }
  func.func @transform_2(%arg0: i32) -> (i32, i32, i32) {
    %c0_i32 = arith.constant 0 : i32
    %c0_i32_0 = arith.constant 0 : i32
    %c0_i32_1 = arith.constant 0 : i32
    return %arg0, %c0_i32, %c0_i32_0 : i32, i32, i32
  }
  func.func @transform_3(%arg0: i32) -> (i32, i32) {
    %c0_i32 = arith.constant 0 : i32
    %c0_i32_0 = arith.constant 0 : i32
    %c0_i32_1 = arith.constant 0 : i32
    return %c0_i32, %c0_i32_0 : i32, i32
  }
  func.func @transform_4(%arg0: i32) -> (i32, i32) {
    %c0_i32 = arith.constant 0 : i32
    %c0_i32_0 = arith.constant 0 : i32
    %c0_i32_1 = arith.constant 0 : i32
    return %c0_i32, %c0_i32_0 : i32, i32
  }
  func.func @transform_5(%arg0: i32) -> (i32, i32) {
    %c0_i32 = arith.constant 0 : i32
    %c0_i32_0 = arith.constant 0 : i32
    %c0_i32_1 = arith.constant 0 : i32
    return %c0_i32, %c0_i32_0 : i32, i32
  }
  func.func @transform_6(%arg0: i32) -> (i32, i32) {
    %c0_i32 = arith.constant 0 : i32
    %c0_i32_0 = arith.constant 0 : i32
    %c0_i32_1 = arith.constant 0 : i32
    return %c0_i32, %c0_i32_0 : i32, i32
  }
  func.func @transform_7(%arg0: i32) -> (i32, i32, i32) {
    %c0_i32 = arith.constant 0 : i32
    %c0_i32_0 = arith.constant 0 : i32
    %c0_i32_1 = arith.constant 0 : i32
    return %arg0, %c0_i32, %c0_i32_0 : i32, i32, i32
  }
  func.func @transform_8(%arg0: i32) -> (i32, i32, i32) {
    %c0_i32 = arith.constant 0 : i32
    %c0_i32_0 = arith.constant 0 : i32
    %c0_i32_1 = arith.constant 0 : i32
    return %arg0, %c0_i32, %c0_i32_0 : i32, i32, i32
  }
}

module attributes {stable_mosaic.version = 11 : i64} {
  func.func @_self_attention_kernel(%arg0: i32, %arg1: memref<1x8x128xf32, #tpu.memory_space<vmem>>, %arg2: memref<1x1x8xf32, #tpu.memory_space<vmem>>, %arg3: memref<1x8x1xf32, #tpu.memory_space<vmem>>, %arg4: memref<128x384xbf16, #tpu.memory_space<vmem>>, %arg5: memref<1x384xf32, #tpu.memory_space<vmem>>, %arg6: memref<128x128xbf16, #tpu.memory_space<vmem>>, %arg7: memref<1x128xf32, #tpu.memory_space<vmem>>, %arg8: memref<1x8x128xf32, #tpu.memory_space<vmem>>, %arg9: memref<1x8x8xbf16, #tpu.memory_space<vmem>>) attributes {dimension_semantics = [#tpu.dimension_semantics<parallel>], iteration_bounds = array<i64: 2>, scalar_prefetch = 0 : i64, scratch_operands = 0 : i64, tpu.core_type = #tpu.core_type<tc>, window_params = [{transform_indices = @transform_0, window_bounds = array<i64: 1, 8, 128>}, {transform_indices = @transform_1, window_bounds = array<i64: 1, 1, 8>}, {transform_indices = @transform_2, window_bounds = array<i64: 1, 8, 1>}, {pipeline_mode = #tpu.pipeline_mode<synchronous>, transform_indices = @transform_3, window_bounds = array<i64: 128, 384>}, {pipeline_mode = #tpu.pipeline_mode<synchronous>, transform_indices = @transform_4, window_bounds = array<i64: 1, 384>}, {pipeline_mode = #tpu.pipeline_mode<synchronous>, transform_indices = @transform_5, window_bounds = array<i64: 128, 128>}, {pipeline_mode = #tpu.pipeline_mode<synchronous>, transform_indices = @transform_6, window_bounds = array<i64: 1, 128>}, {transform_indices = @transform_7, window_bounds = array<i64: 1, 8, 128>}, {transform_indices = @transform_8, window_bounds = array<i64: 1, 8, 8>}]} {
    %c0 = arith.constant 0 : index
    %c0_0 = arith.constant 0 : index
    %c0_1 = arith.constant 0 : index
    %0 = vector.load %arg1[%c0, %c0_0, %c0_1] : memref<1x8x128xf32, #tpu.memory_space<vmem>>, vector<1x8x128xf32>
    %1 = vector.shape_cast %0 : vector<1x8x128xf32> to vector<8x128xf32>
    %2 = arith.truncf %1 : vector<8x128xf32> to vector<8x128xbf16>
    %c0_2 = arith.constant 0 : index
    %c0_3 = arith.constant 0 : index
    %3 = vector.load %arg4[%c0_2, %c0_3] : memref<128x384xbf16, #tpu.memory_space<vmem>>, vector<128x384xbf16>
    %cst = arith.constant dense<0.000000e+00> : vector<8x384xf32>
    %4 = tpu.matmul %2, %3, %cst {dimension_numbers = #tpu.dot_dimension_numbers<[1], [0], [0], [1], [0, 0, 1, 1], [], []>} : vector<8x128xbf16>, vector<128x384xbf16>, vector<8x384xf32> -> vector<8x384xf32>
    %c0_4 = arith.constant 0 : index
    %c0_5 = arith.constant 0 : index
    %5 = vector.load %arg5[%c0_4, %c0_5] : memref<1x384xf32, #tpu.memory_space<vmem>>, vector<1x384xf32>
    %6 = vector.broadcast %5 : vector<1x384xf32> to vector<8x384xf32>
    %7 = arith.addf %4, %6 : vector<8x384xf32>
    %8 = vector.extract_strided_slice %7 {offsets = [0, 0], sizes = [8, 128], strides = [1, 1]} : vector<8x384xf32> to vector<8x128xf32>
    %9 = vector.shape_cast %8 : vector<8x128xf32> to vector<1x8x128xf32>
    %10 = arith.truncf %9 : vector<1x8x128xf32> to vector<1x8x128xbf16>
    %11 = vector.extract_strided_slice %7 {offsets = [0, 128], sizes = [8, 128], strides = [1, 1]} : vector<8x384xf32> to vector<8x128xf32>
    %12 = vector.shape_cast %11 : vector<8x128xf32> to vector<1x8x128xf32>
    %13 = arith.truncf %12 : vector<1x8x128xf32> to vector<1x8x128xbf16>
    %14 = vector.extract_strided_slice %7 {offsets = [0, 256], sizes = [8, 128], strides = [1, 1]} : vector<8x384xf32> to vector<8x128xf32>
    %15 = vector.shape_cast %14 : vector<8x128xf32> to vector<1x8x128xf32>
    %16 = arith.truncf %15 : vector<1x8x128xf32> to vector<1x8x128xbf16>
    "tpu.trace_start"() <{level = 10 : i32, message = "bqh,bkh->bqk"}> : () -> ()
    %cst_6 = arith.constant dense<0.000000e+00> : vector<1x8x8xf32>
    %17 = tpu.matmul %10, %13, %cst_6 {dimension_numbers = #tpu.dot_dimension_numbers<[2], [2], [1], [1], [0, 0, 0, 1, 1, 1], [0], [0]>} : vector<1x8x128xbf16>, vector<1x8x128xbf16>, vector<1x8x8xf32> -> vector<1x8x8xf32>
    "tpu.trace_stop"() : () -> ()
    %c0_7 = arith.constant 0 : index
    %c0_8 = arith.constant 0 : index
    %c0_9 = arith.constant 0 : index
    %18 = vector.load %arg2[%c0_7, %c0_8, %c0_9] : memref<1x1x8xf32, #tpu.memory_space<vmem>>, vector<1x1x8xf32>
    %19 = vector.broadcast %18 : vector<1x1x8xf32> to vector<1x8x8xf32>
    %20 = arith.addf %17, %19 : vector<1x8x8xf32>
    %cst_10 = arith.constant dense<0xFF800000> : vector<1x8xf32>
    %21 = vector.multi_reduction <maximumf>, %20, %cst_10 [2] : vector<1x8x8xf32> to vector<1x8xf32>
    %22 = vector.shape_cast %21 : vector<1x8xf32> to vector<1x8x1xf32>
    %23 = vector.broadcast %22 : vector<1x8x1xf32> to vector<1x8x8xf32>
    %24 = arith.subf %20, %23 : vector<1x8x8xf32>
    %25 = math.exp %24 : vector<1x8x8xf32>
    %cst_11 = arith.constant dense<0.000000e+00> : vector<1x8xf32>
    %26 = vector.multi_reduction <add>, %25, %cst_11 [2] : vector<1x8x8xf32> to vector<1x8xf32>
    %27 = vector.shape_cast %26 : vector<1x8xf32> to vector<1x8x1xf32>
    %28 = vector.broadcast %27 : vector<1x8x1xf32> to vector<1x8x8xf32>
    %29 = arith.divf %25, %28 : vector<1x8x8xf32>
    %30 = arith.truncf %29 : vector<1x8x8xf32> to vector<1x8x8xbf16>
    "tpu.trace_start"() <{level = 10 : i32, message = "bqk,bkh->bqh"}> : () -> ()
    %cst_12 = arith.constant dense<0.000000e+00> : vector<1x8x128xf32>
    %31 = tpu.matmul %30, %16, %cst_12 {dimension_numbers = #tpu.dot_dimension_numbers<[2], [1], [1], [2], [0, 0, 0, 1, 1, 2], [0], [0]>} : vector<1x8x8xbf16>, vector<1x8x128xbf16>, vector<1x8x128xf32> -> vector<1x8x128xf32>
    "tpu.trace_stop"() : () -> ()
    %32 = vector.shape_cast %31 : vector<1x8x128xf32> to vector<8x128xf32>
    %33 = arith.truncf %32 : vector<8x128xf32> to vector<8x128xbf16>
    %c0_13 = arith.constant 0 : index
    %c0_14 = arith.constant 0 : index
    %34 = vector.load %arg6[%c0_13, %c0_14] : memref<128x128xbf16, #tpu.memory_space<vmem>>, vector<128x128xbf16>
    %cst_15 = arith.constant dense<0.000000e+00> : vector<8x128xf32>
    %35 = tpu.matmul %33, %34, %cst_15 {dimension_numbers = #tpu.dot_dimension_numbers<[1], [0], [0], [1], [0, 0, 1, 1], [], []>} : vector<8x128xbf16>, vector<128x128xbf16>, vector<8x128xf32> -> vector<8x128xf32>
    %c0_16 = arith.constant 0 : index
    %c0_17 = arith.constant 0 : index
    %36 = vector.load %arg7[%c0_16, %c0_17] : memref<1x128xf32, #tpu.memory_space<vmem>>, vector<1x128xf32>
    %37 = vector.broadcast %36 : vector<1x128xf32> to vector<8x128xf32>
    %38 = arith.addf %35, %37 : vector<8x128xf32>
    %39 = vector.shape_cast %38 : vector<8x128xf32> to vector<1x8x128xf32>
    %c0_18 = arith.constant 0 : index
    %c0_19 = arith.constant 0 : index
    %c0_20 = arith.constant 0 : index
    %40 = vector.load %arg3[%c0_18, %c0_19, %c0_20] : memref<1x8x1xf32, #tpu.memory_space<vmem>>, vector<1x8x1xf32>
    %41 = vector.broadcast %40 : vector<1x8x1xf32> to vector<1x8x128xf32>
    %42 = arith.mulf %39, %41 : vector<1x8x128xf32>
    %c0_21 = arith.constant 0 : index
    %c0_22 = arith.constant 0 : index
    %c0_23 = arith.constant 0 : index
    %43 = vector.load %arg8[%c0_21, %c0_22, %c0_23] : memref<1x8x128xf32, #tpu.memory_space<vmem>>, vector<1x8x128xf32>
    tpu.vector_store %arg8[%c0_21, %c0_22, %c0_23], %42 {strides = array<i32>} : memref<1x8x128xf32, #tpu.memory_space<vmem>>, vector<1x8x128xf32>,
    %44 = arith.truncf %29 : vector<1x8x8xf32> to vector<1x8x8xbf16>
    %c0_24 = arith.constant 0 : index
    %c0_25 = arith.constant 0 : index
    %c0_26 = arith.constant 0 : index
    %45 = vector.load %arg9[%c0_24, %c0_25, %c0_26] : memref<1x8x8xbf16, #tpu.memory_space<vmem>>, vector<1x8x8xbf16>
    tpu.vector_store %arg9[%c0_24, %c0_25, %c0_26], %44 {strides = array<i32>} : memref<1x8x8xbf16, #tpu.memory_space<vmem>>, vector<1x8x8xbf16>,
    return
  }
  func.func @transform_0(%arg0: i32) -> (i32, i32, i32) {
    %c0_i32 = arith.constant 0 : i32
    %c0_i32_0 = arith.constant 0 : i32
    %c0_i32_1 = arith.constant 0 : i32
    return %arg0, %c0_i32, %c0_i32_0 : i32, i32, i32
  }
  func.func @transform_1(%arg0: i32) -> (i32, i32, i32) {
    %c0_i32 = arith.constant 0 : i32
    %c0_i32_0 = arith.constant 0 : i32
    %c0_i32_1 = arith.constant 0 : i32
    return %arg0, %c0_i32, %c0_i32_0 : i32, i32, i32
  }
  func.func @transform_2(%arg0: i32) -> (i32, i32, i32) {
    %c0_i32 = arith.constant 0 : i32
    %c0_i32_0 = arith.constant 0 : i32
    %c0_i32_1 = arith.constant 0 : i32
    return %arg0, %c0_i32, %c0_i32_0 : i32, i32, i32
  }
  func.func @transform_3(%arg0: i32) -> (i32, i32) {
    %c0_i32 = arith.constant 0 : i32
    %c0_i32_0 = arith.constant 0 : i32
    %c0_i32_1 = arith.constant 0 : i32
    return %c0_i32, %c0_i32_0 : i32, i32
  }
  func.func @transform_4(%arg0: i32) -> (i32, i32) {
    %c0_i32 = arith.constant 0 : i32
    %c0_i32_0 = arith.constant 0 : i32
    %c0_i32_1 = arith.constant 0 : i32
    return %c0_i32, %c0_i32_0 : i32, i32
  }
  func.func @transform_5(%arg0: i32) -> (i32, i32) {
    %c0_i32 = arith.constant 0 : i32
    %c0_i32_0 = arith.constant 0 : i32
    %c0_i32_1 = arith.constant 0 : i32
    return %c0_i32, %c0_i32_0 : i32, i32
  }
  func.func @transform_6(%arg0: i32) -> (i32, i32) {
    %c0_i32 = arith.constant 0 : i32
    %c0_i32_0 = arith.constant 0 : i32
    %c0_i32_1 = arith.constant 0 : i32
    return %c0_i32, %c0_i32_0 : i32, i32
  }
  func.func @transform_7(%arg0: i32) -> (i32, i32, i32) {
    %c0_i32 = arith.constant 0 : i32
    %c0_i32_0 = arith.constant 0 : i32
    %c0_i32_1 = arith.constant 0 : i32
    return %arg0, %c0_i32, %c0_i32_0 : i32, i32, i32
  }
  func.func @transform_8(%arg0: i32) -> (i32, i32, i32) {
    %c0_i32 = arith.constant 0 : i32
    %c0_i32_0 = arith.constant 0 : i32
    %c0_i32_1 = arith.constant 0 : i32
    return %arg0, %c0_i32, %c0_i32_0 : i32, i32, i32
  }
}

</mosaic_0001>

<llo_original>
// kernel: tpu_custom_call.1
$region0: #{tpu_custom_call.1}
  #allocation0 [shape = 'u32[]', space=smem, size = 0x4, offset = 0x4, fixed_abs, tag = 'smem constant byte address 0x4 - core index']
  #allocation1 [shape = 'u32[144,128]{1,0:T(1,128)}', space=vmem, size = 0x12000, scoped, tag = 'internal scratch']
  %s0 = inlined_call_operand.vmem [shape: f32[2,8,128], index: 0, kind: input, shape index: {}]
  %s1 = inlined_call_operand.hbm [shape: f32[2,1,8], index: 1, kind: input, shape index: {}]
  %s2 = inlined_call_operand.vmem [shape: f32[2,8,1], index: 2, kind: input, shape index: {}]
  %s3 = inlined_call_operand.hbm [shape: bf16[128,384], index: 3, kind: input, shape index: {}]
  %s4 = inlined_call_operand.vmem [shape: f32[1,384], index: 4, kind: input, shape index: {}]
  %s5 = inlined_call_operand.hbm [shape: bf16[128,128], index: 5, kind: input, shape index: {}]
  %s6 = inlined_call_operand.vmem [shape: f32[1,128], index: 6, kind: input, shape index: {}]
  %s7 = inlined_call_operand.hbm [shape: f32[2,8,128], index: 7, kind: output, shape index: {0}]
  %s8 = inlined_call_operand.hbm [shape: bf16[2,8,8], index: 8, kind: output, shape index: {1}]
  %9 = xla_tuple %s7, %s8
  %s10 = sld [smem:[#allocation0]]
  $region81: #{tpu_custom_call.1} parent=0
    _
  %s12 = ssub.s32 1, %s10
  %s13 = scalar_select 0, %s12, %s10
  $region1: #{tpu_custom_call.1} parent=0
    #allocation2 [shape = 'u8[1024]{0}', space=vmem, size = 0x400, scoped, tag = 'input window, operand 1']
    #allocation3 [shape = 's32[2]{0}', space=sflag, size = 0x8, scoped, tag = 'scoped memory for tpu_custom_call.1']
    #allocation4 [shape = 's32[2]{0}', space=sflag, size = 0x8, scoped, tag = 'scoped memory for tpu_custom_call.1']
    #allocation5 [shape = 'u8[98304]{0}', space=vmem, size = 0x18000, scoped, tag = 'input window, operand 3, single buffered']
    #allocation6 [shape = 's32[1]{0}', space=sflag, size = 0x4, scoped, tag = 'scoped memory for tpu_custom_call.1']
    #allocation7 [shape = 'u8[32768]{0}', space=vmem, size = 0x8000, scoped, tag = 'input window, operand 5, single buffered']
    #allocation8 [shape = 'u8[8192]{0}', space=vmem, size = 0x2000, scoped, tag = 'output window, operand 0']
    #allocation9 [shape = 'u8[4096]{0}', space=vmem, size = 0x1000, scoped, tag = 'output window, operand 1']
    #allocation10 [shape = 's32[2]{0}', space=sflag, size = 0x8, scoped, tag = 'scoped memory for tpu_custom_call.1']
    %14 = vsyncpa [#allocation3], 0
    %s15 = scalar_lea.sflag [#allocation3], 1
    %16 = vsyncpa %s15, 0
    %17 = vsyncpa [#allocation6], 0
    %18 = vsyncpa [#allocation4], 0
    %s19 = scalar_lea.sflag [#allocation4], 1
    %20 = vsyncpa %s19, 0
    %21 = vsyncpa [#allocation10], 0
    %s22 = scalar_lea.sflag [#allocation10], 1
    %23 = vsyncpa %s22, 0
    loop: start=0, step=1, limit=4
    $region2: #{tpu_custom_call.1} parent=1 // loop_pre_header
      _
    $region3: #{tpu_custom_call.1} parent=1 // loop_header
      %s25 = sphi 0, %s29
      %p26 = scmp.ge.s32.totalorder %s25, 4
      %s35 = sphi 0, %s37
      %s38 = sphi 0, %s35
      %s39 = sphi 0, %s38
      %s55 = sphi 0, %s39
      %s61 = sphi 0, %s63
      %s64 = sphi 0, %s61
      %s65 = sphi 0, %s64
      %s81 = sphi 0, %s65
      %s87 = sphi 0, %s89
      %s90 = sphi 0, %s87
      %s91 = sphi 0, %s90
      %s107 = sphi 0, %s91
      %s111 = sphi 0, %s111
      %s113 = sphi 0, %s111
      %s114 = sphi 0, %s113
      %s128 = sphi 0, %s114
      %s132 = sphi 0, %s132
      %s134 = sphi 0, %s132
      %s135 = sphi 0, %s134
      %s149 = sphi 0, %s135
      %s153 = sphi 0, %s153
      %s155 = sphi 0, %s153
      %s156 = sphi 0, %s155
      %s170 = sphi 0, %s156
      %s174 = sphi 0, %s174
      %s176 = sphi 0, %s174
      %s177 = sphi 0, %s176
      %s191 = sphi 0, %s177
      %s197 = sphi 0, %s199
      %s200 = sphi 0, %s197
      %s201 = sphi 0, %s200
      %s217 = sphi 0, %s201
      %s223 = sphi 0, %s225
      %s226 = sphi 0, %s223
      %s227 = sphi 0, %s226
      %s243 = sphi 0, %s227
    $region4: #{tpu_custom_call.1} parent=1 // loop_header_branch
      %28 = sbr.rel (%p26) target = $region8
    $region5: #{tpu_custom_call.1} parent=1 // loop_body
      %s30 = ssub.s32 %s25, 1
      %s31 = ssub.s32 %s25, 2
      %s32 = sadd.s32 %s25, 1
      %s33 = ssub.s32 %s25, %s32
      %p34 = scmp.eq.s32.totalorder %s33, 0
      %s36 = sadd.s32 %s35, 1
      %s37 = scalar_select %p34, %s35, %s36
      %p40 = pneg %p34
      %p41 = scmp.eq.s32.totalorder %s25, 1
      %p42 = por %p40, %p41
      %p43 = scmp.ne.s32.totalorder %s35, %s38
      %p44 = scmp.eq.s32.totalorder %s25, 0
      %p45 = por %p43, %p44
      %p46 = scmp.ne.s32.totalorder %s35, %s38
      %p47 = scmp.eq.s32.totalorder %s30, 1
      %p48 = por %p46, %p47
      %p49 = scmp.ne.s32.totalorder %s38, %s39
      %p50 = scmp.eq.s32.totalorder %s30, 0
      %p51 = por %p49, %p50
      %p52 = scmp.ne.s32.totalorder %s38, %s39
      %p53 = scmp.eq.s32.totalorder %s31, 1
      %p54 = por %p52, %p53
      %p56 = scmp.ne.s32.totalorder %s39, %s55
      %p57 = scmp.eq.s32.totalorder %s31, 0
      %p58 = por %p56, %p57
      %s59 = ssub.s32 %s25, %s32
      %p60 = scmp.eq.s32.totalorder %s59, 0
      %s62 = sadd.s32 %s61, 1
      %s63 = scalar_select %p60, %s61, %s62
      %p66 = pneg %p60
      %p67 = scmp.eq.s32.totalorder %s25, 1
      %p68 = por %p66, %p67
      %p69 = scmp.ne.s32.totalorder %s61, %s64
      %p70 = scmp.eq.s32.totalorder %s25, 0
      %p71 = por %p69, %p70
      %p72 = scmp.ne.s32.totalorder %s61, %s64
      %p73 = scmp.eq.s32.totalorder %s30, 1
      %p74 = por %p72, %p73
      %p75 = scmp.ne.s32.totalorder %s64, %s65
      %p76 = scmp.eq.s32.totalorder %s30, 0
      %p77 = por %p75, %p76
      %p78 = scmp.ne.s32.totalorder %s64, %s65
      %p79 = scmp.eq.s32.totalorder %s31, 1
      %p80 = por %p78, %p79
      %p82 = scmp.ne.s32.totalorder %s65, %s81
      %p83 = scmp.eq.s32.totalorder %s31, 0
      %p84 = por %p82, %p83
      %s85 = ssub.s32 %s25, %s32
      %p86 = scmp.eq.s32.totalorder %s85, 0
      %s88 = sadd.s32 %s87, 1
      %s89 = scalar_select %p86, %s87, %s88
      %p92 = pneg %p86
      %p93 = scmp.eq.s32.totalorder %s25, 1
      %p94 = por %p92, %p93
      %p95 = scmp.ne.s32.totalorder %s87, %s90
      %p96 = scmp.eq.s32.totalorder %s25, 0
      %p97 = por %p95, %p96
      %p98 = scmp.ne.s32.totalorder %s87, %s90
      %p99 = scmp.eq.s32.totalorder %s30, 1
      %p100 = por %p98, %p99
      %p101 = scmp.ne.s32.totalorder %s90, %s91
      %p102 = scmp.eq.s32.totalorder %s30, 0
      %p103 = por %p101, %p102
      %p104 = scmp.ne.s32.totalorder %s90, %s91
      %p105 = scmp.eq.s32.totalorder %s31, 1
      %p106 = por %p104, %p105
      %p108 = scmp.ne.s32.totalorder %s91, %s107
      %p109 = scmp.eq.s32.totalorder %s31, 0
      %p110 = por %p108, %p109
      %s112 = sadd.s32 %s111, 1
      %p115 = scmp.eq.s32.totalorder %s25, 1
      %p116 = scmp.ne.s32.totalorder %s111, %s113
      %p117 = scmp.eq.s32.totalorder %s25, 0
      %p118 = por %p116, %p117
      %p119 = scmp.ne.s32.totalorder %s111, %s113
      %p120 = scmp.eq.s32.totalorder %s30, 1
      %p121 = por %p119, %p120
      %p122 = scmp.ne.s32.totalorder %s113, %s114
      %p123 = scmp.eq.s32.totalorder %s30, 0
      %p124 = por %p122, %p123
      %p125 = scmp.ne.s32.totalorder %s113, %s114
      %p126 = scmp.eq.s32.totalorder %s31, 1
      %p127 = por %p125, %p126
      %p129 = scmp.ne.s32.totalorder %s114, %s128
      %p130 = scmp.eq.s32.totalorder %s31, 0
      %p131 = por %p129, %p130
      %s133 = sadd.s32 %s132, 1
      %p136 = scmp.eq.s32.totalorder %s25, 1
      %p137 = scmp.ne.s32.totalorder %s132, %s134
      %p138 = scmp.eq.s32.totalorder %s25, 0
      %p139 = por %p137, %p138
      %p140 = scmp.ne.s32.totalorder %s132, %s134
      %p141 = scmp.eq.s32.totalorder %s30, 1
      %p142 = por %p140, %p141
      %p143 = scmp.ne.s32.totalorder %s134, %s135
      %p144 = scmp.eq.s32.totalorder %s30, 0
      %p145 = por %p143, %p144
      %p146 = scmp.ne.s32.totalorder %s134, %s135
      %p147 = scmp.eq.s32.totalorder %s31, 1
      %p148 = por %p146, %p147
      %p150 = scmp.ne.s32.totalorder %s135, %s149
      %p151 = scmp.eq.s32.totalorder %s31, 0
      %p152 = por %p150, %p151
      %s154 = sadd.s32 %s153, 1
      %p157 = scmp.eq.s32.totalorder %s25, 1
      %p158 = scmp.ne.s32.totalorder %s153, %s155
      %p159 = scmp.eq.s32.totalorder %s25, 0
      %p160 = por %p158, %p159
      %p161 = scmp.ne.s32.totalorder %s153, %s155
      %p162 = scmp.eq.s32.totalorder %s30, 1
      %p163 = por %p161, %p162
      %p164 = scmp.ne.s32.totalorder %s155, %s156
      %p165 = scmp.eq.s32.totalorder %s30, 0
      %p166 = por %p164, %p165
      %p167 = scmp.ne.s32.totalorder %s155, %s156
      %p168 = scmp.eq.s32.totalorder %s31, 1
      %p169 = por %p167, %p168
      %p171 = scmp.ne.s32.totalorder %s156, %s170
      %p172 = scmp.eq.s32.totalorder %s31, 0
      %p173 = por %p171, %p172
      %s175 = sadd.s32 %s174, 1
      %p178 = scmp.eq.s32.totalorder %s25, 1
      %p179 = scmp.ne.s32.totalorder %s174, %s176
      %p180 = scmp.eq.s32.totalorder %s25, 0
      %p181 = por %p179, %p180
      %p182 = scmp.ne.s32.totalorder %s174, %s176
      %p183 = scmp.eq.s32.totalorder %s30, 1
      %p184 = por %p182, %p183
      %p185 = scmp.ne.s32.totalorder %s176, %s177
      %p186 = scmp.eq.s32.totalorder %s30, 0
      %p187 = por %p185, %p186
      %p188 = scmp.ne.s32.totalorder %s176, %s177
      %p189 = scmp.eq.s32.totalorder %s31, 1
      %p190 = por %p188, %p189
      %p192 = scmp.ne.s32.totalorder %s177, %s191
      %p193 = scmp.eq.s32.totalorder %s31, 0
      %p194 = por %p192, %p193
      %s195 = ssub.s32 %s25, %s32
      %p196 = scmp.eq.s32.totalorder %s195, 0
      %s198 = sadd.s32 %s197, 1
      %s199 = scalar_select %p196, %s197, %s198
      %p202 = pneg %p196
      %p203 = scmp.eq.s32.totalorder %s25, 1
      %p204 = por %p202, %p203
      %p205 = scmp.ne.s32.totalorder %s197, %s200
      %p206 = scmp.eq.s32.totalorder %s25, 0
      %p207 = por %p205, %p206
      %p208 = scmp.ne.s32.totalorder %s197, %s200
      %p209 = scmp.eq.s32.totalorder %s30, 1
      %p210 = por %p208, %p209
      %p211 = scmp.ne.s32.totalorder %s200, %s201
      %p212 = scmp.eq.s32.totalorder %s30, 0
      %p213 = por %p211, %p212
      %p214 = scmp.ne.s32.totalorder %s200, %s201
      %p215 = scmp.eq.s32.totalorder %s31, 1
      %p216 = por %p214, %p215
      %p218 = scmp.ne.s32.totalorder %s201, %s217
      %p219 = scmp.eq.s32.totalorder %s31, 0
      %p220 = por %p218, %p219
      %s221 = ssub.s32 %s25, %s32
      %p222 = scmp.eq.s32.totalorder %s221, 0
      %s224 = sadd.s32 %s223, 1
      %s225 = scalar_select %p222, %s223, %s224
      %p228 = pneg %p222
      %p229 = scmp.eq.s32.totalorder %s25, 1
      %p230 = por %p228, %p229
      %p231 = scmp.ne.s32.totalorder %s223, %s226
      %p232 = scmp.eq.s32.totalorder %s25, 0
      %p233 = por %p231, %p232
      %p234 = scmp.ne.s32.totalorder %s223, %s226
      %p235 = scmp.eq.s32.totalorder %s30, 1
      %p236 = por %p234, %p235
      %p237 = scmp.ne.s32.totalorder %s226, %s227
      %p238 = scmp.eq.s32.totalorder %s30, 0
      %p239 = por %p237, %p238
      %p240 = scmp.ne.s32.totalorder %s226, %s227
      %p241 = scmp.eq.s32.totalorder %s31, 1
      %p242 = por %p240, %p241
      %p244 = scmp.ne.s32.totalorder %s227, %s243
      %p245 = scmp.eq.s32.totalorder %s31, 0
      %p246 = por %p244, %p245
      %p247 = scmp.le.s32.totalorder 1, %s25
      %p248 = scmp.lt.s32.totalorder %s25, 3
      %p249 = pnand %p247, %p248
      %p250 = pneg %p249
      // Predicated region
      $region9: #{tpu_custom_call.1} parent=5 // pred_check
        _
      $region10: #{tpu_custom_call.1} parent=5 // pred_check_branch
        %252 = sbr.rel (%p249) target = $region12
      $region11: #{tpu_custom_call.1} parent=5 // pred_region
        %s253 = ssub.s32 %s25, 1
        // Predicated region
        $region13: #{tpu_custom_call.1} parent=11 // pred_check
          %p254 = pneg %p124
        $region14: #{tpu_custom_call.1} parent=11 // pred_check_branch
          %256 = sbr.rel (%p254) target = $region16
        $region15: #{tpu_custom_call.1} parent=11 // pred_region
          %s258 = ssub.s32 3072, 3072
          %259 = vsyncadd [#allocation6], %s258
          %s260 = sshll.u32 [#allocation5], 4
          %s261 = int_to_ptr.vmem [resolvable:$true] %s260
          %266 = dma.hbm_to_vmem [thread:$0]  %s3, 3072, %s261, [#allocation6], 192, 192, 12
        $region16: #{tpu_custom_call.1} parent=11 // pred_fallthru
          _
        // Predicated region
        $region17: #{tpu_custom_call.1} parent=11 // pred_check
          %p267 = pneg %p145
        $region18: #{tpu_custom_call.1} parent=11 // pred_check_branch
          %269 = sbr.rel (%p267) target = $region20
        $region19: #{tpu_custom_call.1} parent=11 // pred_region
          _
        $region20: #{tpu_custom_call.1} parent=11 // pred_fallthru
          _
        // Predicated region
        $region21: #{tpu_custom_call.1} parent=11 // pred_check
          %p270 = pneg %p166
        $region22: #{tpu_custom_call.1} parent=11 // pred_check_branch
          %272 = sbr.rel (%p270) target = $region24
        $region23: #{tpu_custom_call.1} parent=11 // pred_region
          %s274 = ssub.s32 1024, 1024
          %275 = vsyncadd [#allocation6], %s274
          %s276 = sshll.u32 [#allocation7], 4
          %s277 = int_to_ptr.vmem [resolvable:$true] %s276
          %282 = dma.hbm_to_vmem [thread:$0]  %s5, 1024, %s277, [#allocation6], 64, 64, 4
        $region24: #{tpu_custom_call.1} parent=11 // pred_fallthru
          _
        // Predicated region
        $region25: #{tpu_custom_call.1} parent=11 // pred_check
          %p283 = pneg %p187
        $region26: #{tpu_custom_call.1} parent=11 // pred_check_branch
          %285 = sbr.rel (%p283) target = $region28
        $region27: #{tpu_custom_call.1} parent=11 // pred_region
          _
        $region28: #{tpu_custom_call.1} parent=11 // pred_fallthru
          _
      $region12: #{tpu_custom_call.1} parent=5 // pred_fallthru
        _
      %p286 = scmp.lt.s32.totalorder %s25, 2
      // Predicated region
      $region29: #{tpu_custom_call.1} parent=5 // pred_check
        %p287 = pneg %p286
      $region30: #{tpu_custom_call.1} parent=5 // pred_check_branch
        %289 = sbr.rel (%p287) target = $region32
      $region31: #{tpu_custom_call.1} parent=5 // pred_region
        // Predicated region
        $region33: #{tpu_custom_call.1} parent=31 // pred_check
          %p290 = pneg %p45
        $region34: #{tpu_custom_call.1} parent=31 // pred_check_branch
          %292 = sbr.rel (%p290) target = $region36
        $region35: #{tpu_custom_call.1} parent=31 // pred_region
          %p293 = scmp.lt.s32.totalorder %s25, 1
          %s294 = scalar_select %p293, %s25, 1
          %s295 = smul.addr %s294, 8
          %s296 = scalar_lea.vmem %s0, %s295
        $region36: #{tpu_custom_call.1} parent=31 // pred_fallthru
          _
        // Predicated region
        $region37: #{tpu_custom_call.1} parent=31 // pred_check
          %p297 = pneg %p71
        $region38: #{tpu_custom_call.1} parent=31 // pred_check_branch
          %299 = sbr.rel (%p297) target = $region40
        $region39: #{tpu_custom_call.1} parent=31 // pred_region
          %s300 = sand.u32 %s61, 1
          %s301 = scalar_lea.sflag [#allocation3], %s300
          %s302 = sand.u32 %s61, 1
          %s303 = scalar_lea.vmem [#allocation2], %s302
          %s305 = ssub.s32 16, 16
          %306 = vsyncadd %s301, %s305
          %s307 = smul.addr %s25, 16
          %s308 = scalar_lea.hbm %s1, %s307
          %s310 = sshll.u32 %s303, 4
          %s311 = int_to_ptr.vmem [resolvable:$true] %s310
          %313 = dma.hbm_to_vmem [thread:$0]  %s308, 16, %s311, %s301
        $region40: #{tpu_custom_call.1} parent=31 // pred_fallthru
          _
        // Predicated region
        $region41: #{tpu_custom_call.1} parent=31 // pred_check
          %p314 = pneg %p97
        $region42: #{tpu_custom_call.1} parent=31 // pred_check_branch
          %316 = sbr.rel (%p314) target = $region44
        $region43: #{tpu_custom_call.1} parent=31 // pred_region
          %p317 = scmp.lt.s32.totalorder %s25, 1
          %s318 = scalar_select %p317, %s25, 1
          %s319 = smul.addr %s318, 8
          %s320 = scalar_lea.vmem %s2, %s319
        $region44: #{tpu_custom_call.1} parent=31 // pred_fallthru
          _
      $region32: #{tpu_custom_call.1} parent=5 // pred_fallthru
        _
      %p321 = scmp.le.s32.totalorder 1, %s25
      %p322 = scmp.lt.s32.totalorder %s25, 3
      %p323 = pnand %p321, %p322
      %p324 = pneg %p323
      // Predicated region
      $region45: #{tpu_custom_call.1} parent=5 // pred_check
        _
      $region46: #{tpu_custom_call.1} parent=5 // pred_check_branch
        %326 = sbr.rel (%p323) target = $region48
      $region47: #{tpu_custom_call.1} parent=5 // pred_region
        %s327 = ssub.s32 %s25, 1
        %s328 = sand.u32 %s64, 1
        %s329 = scalar_lea.sflag [#allocation3], %s328
        %s330 = sand.u32 %s64, 1
        %s331 = scalar_lea.vmem [#allocation2], %s330
        // Predicated region
        $region49: #{tpu_custom_call.1} parent=47 // pred_check
          %p332 = pneg %p77
        $region50: #{tpu_custom_call.1} parent=47 // pred_check_branch
          %334 = sbr.rel (%p332) target = $region52
        $region51: #{tpu_custom_call.1} parent=47 // pred_region
          %335 = dma.done %s329, 16
        $region52: #{tpu_custom_call.1} parent=47 // pred_fallthru
          _
        // Predicated region
        $region53: #{tpu_custom_call.1} parent=47 // pred_check
          %p336 = pneg %p124
        $region54: #{tpu_custom_call.1} parent=47 // pred_check_branch
          %338 = sbr.rel (%p336) target = $region56
        $region55: #{tpu_custom_call.1} parent=47 // pred_region
          %339 = dma.done [#allocation6], 3072
        $region56: #{tpu_custom_call.1} parent=47 // pred_fallthru
          _
        // Predicated region
        $region57: #{tpu_custom_call.1} parent=47 // pred_check
          %p340 = pneg %p166
        $region58: #{tpu_custom_call.1} parent=47 // pred_check_branch
          %342 = sbr.rel (%p340) target = $region60
        $region59: #{tpu_custom_call.1} parent=47 // pred_region
          %343 = dma.done [#allocation6], 1024
        $region60: #{tpu_custom_call.1} parent=47 // pred_fallthru
          _
        %p344 = scmp.lt.s32.totalorder %s30, 1
        %s345 = scalar_select %p344, %s30, 1
        %s346 = smul.addr %s345, 8
        %s347 = scalar_lea.vmem %s0, %s346
        %p348 = pneg %p51
        %p349 = pneg %p48
        %s350 = sand.u32 %s64, 1
        %s351 = scalar_lea.sflag [#allocation3], %s350
        %s352 = sand.u32 %s64, 1
        %s353 = scalar_lea.vmem [#allocation2], %s352
        %p354 = pneg %p77
        %p355 = pneg %p74
        %p356 = scmp.lt.s32.totalorder %s30, 1
        %s357 = scalar_select %p356, %s30, 1
        %s358 = smul.addr %s357, 8
        %s359 = scalar_lea.vmem %s2, %s358
        %p360 = pneg %p103
        %p361 = pneg %p100
        %p362 = pneg %p124
        %p363 = pneg %p121
        %p364 = pneg %p145
        %p365 = pneg %p142
        %p366 = pneg %p166
        %p367 = pneg %p163
        %p368 = pneg %p187
        %p369 = pneg %p184
        %p370 = pneg %p213
        %p371 = pneg %p210
        %s372 = sand.u32 %s200, 1
        %s373 = scalar_lea.sflag [#allocation4], %s372
        %s374 = sand.u32 %s200, 1
        %s375 = smul.addr %s374, 8
        %s376 = scalar_lea.vmem [#allocation8], %s375
        %p377 = pneg %p239
        %p378 = pneg %p236
        %s379 = sand.u32 %s226, 1
        %s380 = scalar_lea.sflag [#allocation10], %s379
        %s381 = sand.u32 %s226, 1
        %s382 = smul.addr %s381, 4
        %s383 = scalar_lea.vmem [#allocation9], %s382
        %p384 = scmp.lt.s32.totalorder %s30, 1
        %s385 = scalar_select %p384, %s30, 1
        %s386 = smul.addr %s385, 8
        %s387 = scalar_lea.vmem %s0, %s386
        %p388 = scmp.lt.s32.totalorder %s30, 1
        %s389 = scalar_select %p388, %s30, 1
        %s390 = smul.addr %s389, 8
        %s391 = scalar_lea.vmem %s2, %s390
        %v393 = vld [vmem:[%s387] sm:$0xff]
        %v394 = vpack.c.bf16 %v393, %v393
        %v395 = vld [vmem:[#allocation5] sm:$0xff]
        %v396 = vld [vmem:[#allocation5 + $0x8] sm:$0xf]
        %v397 = vld [vmem:[#allocation5 + $0xc] sm:$0xff]
        %v398 = vld [vmem:[#allocation5 + $0x14] sm:$0xf]
        %v399 = vld [vmem:[#allocation5 + $0x18] sm:$0xff]
        %v400 = vld [vmem:[#allocation5 + $0x20] sm:$0xf]
        %v401 = vld [vmem:[#allocation5 + $0x24] sm:$0xff]
        %v402 = vld [vmem:[#allocation5 + $0x2c] sm:$0xf]
        %v403 = vld [vmem:[#allocation5 + $0x30] sm:$0xff]
        %v404 = vld [vmem:[#allocation5 + $0x38] sm:$0xf]
        %v405 = vld [vmem:[#allocation5 + $0x3c] sm:$0xff]
        %v406 = vld [vmem:[#allocation5 + $0x44] sm:$0xf]
        %v407 = vld [vmem:[#allocation5 + $0x48] sm:$0xff]
        %v408 = vld [vmem:[#allocation5 + $0x50] sm:$0xf]
        %v409 = vld [vmem:[#allocation5 + $0x54] sm:$0xff]
        %v410 = vld [vmem:[#allocation5 + $0x5c] sm:$0xf]
        %v411 = vld [vmem:[#allocation5 + $0x60] sm:$0xff]
        %v412 = vld [vmem:[#allocation5 + $0x68] sm:$0xf]
        %v413 = vld [vmem:[#allocation5 + $0x6c] sm:$0xff]
        %v414 = vld [vmem:[#allocation5 + $0x74] sm:$0xf]
        %v415 = vld [vmem:[#allocation5 + $0x78] sm:$0xff]
        %v416 = vld [vmem:[#allocation5 + $0x80] sm:$0xf]
        %v417 = vld [vmem:[#allocation5 + $0x84] sm:$0xff]
        %v418 = vld [vmem:[#allocation5 + $0x8c] sm:$0xf]
        %v419 = vld [vmem:[#allocation5 + $0x90] sm:$0xff]
        %v420 = vld [vmem:[#allocation5 + $0x98] sm:$0xf]
        %v421 = vld [vmem:[#allocation5 + $0x9c] sm:$0xff]
        %v422 = vld [vmem:[#allocation5 + $0xa4] sm:$0xf]
        %v423 = vld [vmem:[#allocation5 + $0xa8] sm:$0xff]
        %v424 = vld [vmem:[#allocation5 + $0xb0] sm:$0xf]
        %v425 = vld [vmem:[#allocation5 + $0xb4] sm:$0xff]
        %v426 = vld [vmem:[#allocation5 + $0xbc] sm:$0xf]
        %v427 = vld [vmem:[%s4] sm:$0x7]
        %v429 = vlaneseq
        %v430 = vshrl.u32 %v429, 7
        %v431 = vsub.s32 0, %v430
        %v432 = vrot.slane %v427, %v431
        %v433 = vlaneseq
        %v434 = vshrl.u32 %v433, 7
        %v435 = vsub.s32 1, %v434
        %v436 = vrot.slane %v427, %v435
        %v437 = vlaneseq
        %v438 = vshrl.u32 %v437, 7
        %v439 = vsub.s32 2, %v438
        %v440 = vrot.slane %v427, %v439
        %v476 = vunpack.c.l.b16 %v395
        %v477 = vunpack.c.h.b16 %v395
        %v478 = vunpack.c.l.b16 %v396
        %v479 = vunpack.c.l.b16 %v397
        %v480 = vunpack.c.h.b16 %v397
        %v481 = vunpack.c.l.b16 %v398
        %v482 = vunpack.c.l.b16 %v399
        %v483 = vunpack.c.h.b16 %v399
        %v484 = vunpack.c.l.b16 %v400
        %v485 = vunpack.c.l.b16 %v401
        %v486 = vunpack.c.h.b16 %v401
        %v487 = vunpack.c.l.b16 %v402
        %v488 = vunpack.c.l.b16 %v403
        %v489 = vunpack.c.h.b16 %v403
        %v490 = vunpack.c.l.b16 %v404
        %v491 = vunpack.c.l.b16 %v405
        %v492 = vunpack.c.h.b16 %v405
        %v493 = vunpack.c.l.b16 %v406
        %v494 = vunpack.c.l.b16 %v407
        %v495 = vunpack.c.h.b16 %v407
        %v496 = vunpack.c.l.b16 %v408
        %v497 = vunpack.c.l.b16 %v409
        %v498 = vunpack.c.h.b16 %v409
        %v499 = vunpack.c.l.b16 %v410
        %v500 = vunpack.c.l.b16 %v411
        %v501 = vunpack.c.h.b16 %v411
        %v502 = vunpack.c.l.b16 %v412
        %v503 = vunpack.c.l.b16 %v413
        %v504 = vunpack.c.h.b16 %v413
        %v505 = vunpack.c.l.b16 %v414
        %v506 = vunpack.c.l.b16 %v415
        %v507 = vunpack.c.h.b16 %v415
        %v508 = vunpack.c.l.b16 %v416
        %v509 = vunpack.c.l.b16 %v417
        %v510 = vunpack.c.h.b16 %v417
        %v511 = vunpack.c.l.b16 %v418
        %v512 = vunpack.c.l.b16 %v419
        %v513 = vunpack.c.h.b16 %v419
        %v514 = vunpack.c.l.b16 %v420
        %v515 = vunpack.c.l.b16 %v421
        %v516 = vunpack.c.h.b16 %v421
        %v517 = vunpack.c.l.b16 %v422
        %v518 = vunpack.c.l.b16 %v423
        %v519 = vunpack.c.h.b16 %v423
        %v520 = vunpack.c.l.b16 %v424
        %v521 = vunpack.c.l.b16 %v425
        %v522 = vunpack.c.h.b16 %v425
        %v523 = vunpack.c.l.b16 %v426
        %v524 = vpack.c.b16 %v479, %v476
        %v525 = vpack.c.b16 %v480, %v477
        %v526 = vpack.c.b16 %v481, %v478
        %v527 = vpack.c.b16 %v485, %v482
        %v528 = vpack.c.b16 %v486, %v483
        %v529 = vpack.c.b16 %v487, %v484
        %v530 = vpack.c.b16 %v491, %v488
        %v531 = vpack.c.b16 %v492, %v489
        %v532 = vpack.c.b16 %v493, %v490
        %v533 = vpack.c.b16 %v497, %v494
        %v534 = vpack.c.b16 %v498, %v495
        %v535 = vpack.c.b16 %v499, %v496
        %v536 = vpack.c.b16 %v503, %v500
        %v537 = vpack.c.b16 %v504, %v501
        %v538 = vpack.c.b16 %v505, %v502
        %v539 = vpack.c.b16 %v509, %v506
        %v540 = vpack.c.b16 %v510, %v507
        %v541 = vpack.c.b16 %v511, %v508
        %v542 = vpack.c.b16 %v515, %v512
        %v543 = vpack.c.b16 %v516, %v513
        %v544 = vpack.c.b16 %v517, %v514
        %v545 = vpack.c.b16 %v521, %v518
        %v546 = vpack.c.b16 %v522, %v519
        %v547 = vpack.c.b16 %v523, %v520
        %572 = vmatprep.subr.bf16.mxu0 %v546
        %573 = vmatpush1.bf16.msra.mxu0 %v545
        %574 = vmatprep.subr.bf16.mxu0 %v543
        %575 = vmatpush1.bf16.msra.mxu0 %v542
        %576 = vmatprep.subr.bf16.mxu0 %v540
        %577 = vmatpush1.bf16.msra.mxu0 %v539
        %578 = vmatprep.subr.bf16.mxu0 %v537
        %579 = vmatpush1.bf16.msra.mxu0 %v536
        %580 = vmatprep.subr.bf16.mxu0 %v534
        %581 = vmatpush1.bf16.msra.mxu0 %v533
        %582 = vmatprep.subr.bf16.mxu0 %v531
        %583 = vmatpush1.bf16.msra.mxu0 %v530
        %584 = vmatprep.subr.bf16.mxu0 %v528
        %585 = vmatpush1.bf16.msra.mxu0 %v527
        %586 = vmatprep.subr.bf16.mxu0 %v525
        %587 = vmatpush1.bf16.msra.mxu0 %v524
        %588 = vmatprep.subr.bf16.mxu0 0
        %589 = vmatpush2.bf16.msra.mxu0 0
        %590 = vmatprep.subr.bf16.mxu0 0
        %591 = vmatpush2.bf16.msra.mxu0 0
        %592 = vmatprep.subr.bf16.mxu0 0
        %593 = vmatpush2.bf16.msra.mxu0 0
        %594 = vmatprep.subr.bf16.mxu0 0
        %595 = vmatpush2.bf16.msra.mxu0 0
        %596 = vmatprep.subr.bf16.mxu0 0
        %597 = vmatpush2.bf16.msra.mxu0 0
        %598 = vmatprep.subr.bf16.mxu0 0
        %599 = vmatpush2.bf16.msra.mxu0 0
        %600 = vmatprep.subr.bf16.mxu0 0
        %601 = vmatpush2.bf16.msra.mxu0 0
        %602 = vmatprep.subr.bf16.mxu0 0
        %603 = vmatpush2.bf16.msra.mxu0 0
        %604 = vmatprep.mubr.bf16.mxu0 0
        %605 = vmatmul.mubr.bf16.gmra.mxu0 %v394
        %v606 = vpop.f32.mrf.mxu0
        %v607 = vadd.f32 %v432, %v606
        %v608 = vpop.f32.mrf.mxu0
        %v609 = vadd.f32 %v436, %v608
        %v610 = vpop.f32.mrf.mxu0
        %v611 = vpop.f32.mrf.mxu0
        %612 = vdwg.mxu0
        %613 = vmatprep.subr.bf16.mxu0 0
        %614 = vmatpush1.bf16.msra.mxu0 %v547
        %615 = vmatprep.subr.bf16.mxu0 0
        %616 = vmatpush1.bf16.msra.mxu0 %v544
        %617 = vmatprep.subr.bf16.mxu0 0
        %618 = vmatpush1.bf16.msra.mxu0 %v541
        %619 = vmatprep.subr.bf16.mxu0 0
        %620 = vmatpush1.bf16.msra.mxu0 %v538
        %621 = vmatprep.subr.bf16.mxu0 0
        %622 = vmatpush1.bf16.msra.mxu0 %v535
        %623 = vmatprep.subr.bf16.mxu0 0
        %624 = vmatpush1.bf16.msra.mxu0 %v532
        %625 = vmatprep.subr.bf16.mxu0 0
        %626 = vmatpush1.bf16.msra.mxu0 %v529
        %627 = vmatprep.subr.bf16.mxu0 0
        %628 = vmatpush1.bf16.msra.mxu0 %v526
        %629 = vmatprep.subr.bf16.mxu0 0
        %630 = vmatpush2.bf16.msra.mxu0 0
        %631 = vmatprep.subr.bf16.mxu0 0
        %632 = vmatpush2.bf16.msra.mxu0 0
        %633 = vmatprep.subr.bf16.mxu0 0
        %634 = vmatpush2.bf16.msra.mxu0 0
        %635 = vmatprep.subr.bf16.mxu0 0
        %636 = vmatpush2.bf16.msra.mxu0 0
        %637 = vmatprep.subr.bf16.mxu0 0
        %638 = vmatpush2.bf16.msra.mxu0 0
        %639 = vmatprep.subr.bf16.mxu0 0
        %640 = vmatpush2.bf16.msra.mxu0 0
        %641 = vmatprep.subr.bf16.mxu0 0
        %642 = vmatpush2.bf16.msra.mxu0 0
        %643 = vmatprep.subr.bf16.mxu0 0
        %644 = vmatpush2.bf16.msra.mxu0 0
        %645 = vmatprep.mubr.bf16.mxu0 0
        %646 = vmatmul.mubr.bf16.gmra.mxu0 %v394
        %v647 = vpop.f32.mrf.mxu0
        %v648 = vadd.f32 %v440, %v647
        %v649 = vpop.f32.mrf.mxu0
        %v650 = vpop.f32.mrf.mxu0
        %v651 = vpop.f32.mrf.mxu0
        %652 = vdwg.mxu0
        %v653 = vpack.c.bf16 %v607, %v607
        %v654 = vpack.c.bf16 %v609, %v609
        %v655 = vpack.c.bf16 %v648, %v648
        %v656 = vld [vmem:[%s331] sm:$0x1]
        %v658 = vlaneseq
        %v659 = vshrl.u32 %v658, 7
        %v660 = vsub.s32 0, %v659
        %v661 = vrot.slane %v656, %v660
        %663 = vmatprep.subr.bf16.mxu0 0
        %664 = vmatpush1.bf16.xpose.msra.mxu0 0
        %665 = vmatprep.subr.bf16.mxu0 0
        %666 = vmatpush1.bf16.xpose.msra.mxu0 0
        %667 = vmatprep.subr.bf16.mxu0 0
        %668 = vmatpush1.bf16.xpose.msra.mxu0 0
        %669 = vmatprep.subr.bf16.mxu0 0
        %670 = vmatpush1.bf16.xpose.msra.mxu0 0
        %671 = vmatprep.subr.bf16.mxu0 0
        %672 = vmatpush1.bf16.xpose.msra.mxu0 0
        %673 = vmatprep.subr.bf16.mxu0 0
        %674 = vmatpush1.bf16.xpose.msra.mxu0 0
        %675 = vmatprep.subr.bf16.mxu0 0
        %676 = vmatpush1.bf16.xpose.msra.mxu0 0
        %677 = vmatprep.subr.bf16.mxu0 0
        %678 = vmatpush1.bf16.xpose.msra.mxu0 %v654
        %679 = vmatprep.subr.bf16.mxu0 0
        %680 = vmatpush2.bf16.xpose.msra.mxu0 0
        %681 = vmatprep.subr.bf16.mxu0 0
        %682 = vmatpush2.bf16.xpose.msra.mxu0 0
        %683 = vmatprep.subr.bf16.mxu0 0
        %684 = vmatpush2.bf16.xpose.msra.mxu0 0
        %685 = vmatprep.subr.bf16.mxu0 0
        %686 = vmatpush2.bf16.xpose.msra.mxu0 0
        %687 = vmatprep.subr.bf16.mxu0 0
        %688 = vmatpush2.bf16.xpose.msra.mxu0 0
        %689 = vmatprep.subr.bf16.mxu0 0
        %690 = vmatpush2.bf16.xpose.msra.mxu0 0
        %691 = vmatprep.subr.bf16.mxu0 0
        %692 = vmatpush2.bf16.xpose.msra.mxu0 0
        %693 = vmatprep.subr.bf16.mxu0 0
        %694 = vmatpush2.bf16.xpose.msra.mxu0 0
        %695 = vmatprep.mubr.bf16.mxu0 0
        %696 = vmatmul.mubr.bf16.gmra.mxu0 %v653
        %v697 = vpop.f32.mrf.mxu0
        %v698 = vadd.f32 %v661, %v697
        %v699 = vpop.f32.mrf.mxu0
        %v700 = vpop.f32.mrf.mxu0
        %v701 = vpop.f32.mrf.mxu0
        %702 = vdwg.mxu0
        %vm703 = vcmask 64512
        %v704 = vsel %vm703, %v698, -inf
        %705 = vmax.xlane.f32.xlu0 %v704
        %v706 = vpop.xlane.xlu0 %705
        %v707 = vsub.f32 %v698, %v706
        %v708 = vmul.f32 %v707, 1.442695
        %v709 = vpow.pop %v708
        %v710 = vsel %vm703, %v709, 0.0
        %711 = vadd.xlane.f32.xlu0 %v710
        %v712 = vpop.xlane.xlu0 %711
        %v713 = vrcp.pop %v712
        %v714 = vmul.f32 %v709, %v713
        %v715 = vpack.c.bf16 %v714, %v714
        %v717 = vsel %vm703, %v715, 0
        %vm719 = vcmask 1043456
        %v721 = vsel %vm719, %v655, 0
        %723 = vmatprep.subr.bf16.mxu0 0
        %724 = vmatpush1.bf16.msra.mxu0 0
        %725 = vmatprep.subr.bf16.mxu0 0
        %726 = vmatpush1.bf16.msra.mxu0 0
        %727 = vmatprep.subr.bf16.mxu0 0
        %728 = vmatpush1.bf16.msra.mxu0 0
        %729 = vmatprep.subr.bf16.mxu0 0
        %730 = vmatpush1.bf16.msra.mxu0 0
        %731 = vmatprep.subr.bf16.mxu0 0
        %732 = vmatpush1.bf16.msra.mxu0 0
        %733 = vmatprep.subr.bf16.mxu0 0
        %734 = vmatpush1.bf16.msra.mxu0 0
        %735 = vmatprep.subr.bf16.mxu0 0
        %736 = vmatpush1.bf16.msra.mxu0 0
        %737 = vmatprep.subr.bf16.mxu0 0
        %738 = vmatpush1.bf16.msra.mxu0 %v721
        %739 = vmatprep.subr.bf16.mxu0 0
        %740 = vmatpush2.bf16.msra.mxu0 0
        %741 = vmatprep.subr.bf16.mxu0 0
        %742 = vmatpush2.bf16.msra.mxu0 0
        %743 = vmatprep.subr.bf16.mxu0 0
        %744 = vmatpush2.bf16.msra.mxu0 0
        %745 = vmatprep.subr.bf16.mxu0 0
        %746 = vmatpush2.bf16.msra.mxu0 0
        %747 = vmatprep.subr.bf16.mxu0 0
        %748 = vmatpush2.bf16.msra.mxu0 0
        %749 = vmatprep.subr.bf16.mxu0 0
        %750 = vmatpush2.bf16.msra.mxu0 0
        %751 = vmatprep.subr.bf16.mxu0 0
        %752 = vmatpush2.bf16.msra.mxu0 0
        %753 = vmatprep.subr.bf16.mxu0 0
        %754 = vmatpush2.bf16.msra.mxu0 0
        %755 = vmatprep.mubr.bf16.mxu0 0
        %756 = vmatmul.mubr.bf16.gmra.mxu0 %v717
        %v757 = vpop.f32.mrf.mxu0
        %v758 = vadd.f32 0.0, %v757
        %v759 = vpop.f32.mrf.mxu0
        %v760 = vpop.f32.mrf.mxu0
        %v761 = vpop.f32.mrf.mxu0
        %762 = vdwg.mxu0
        %v763 = vpack.c.bf16 %v758, %v758
        %v764 = vld [vmem:[#allocation7] sm:$0xf]
        %v765 = vld [vmem:[#allocation7 + $0x4] sm:$0xf]
        %v766 = vld [vmem:[#allocation7 + $0x8] sm:$0xf]
        %v767 = vld [vmem:[#allocation7 + $0xc] sm:$0xf]
        %v768 = vld [vmem:[#allocation7 + $0x10] sm:$0xf]
        %v769 = vld [vmem:[#allocation7 + $0x14] sm:$0xf]
        %v770 = vld [vmem:[#allocation7 + $0x18] sm:$0xf]
        %v771 = vld [vmem:[#allocation7 + $0x1c] sm:$0xf]
        %v772 = vld [vmem:[#allocation7 + $0x20] sm:$0xf]
        %v773 = vld [vmem:[#allocation7 + $0x24] sm:$0xf]
        %v774 = vld [vmem:[#allocation7 + $0x28] sm:$0xf]
        %v775 = vld [vmem:[#allocation7 + $0x2c] sm:$0xf]
        %v776 = vld [vmem:[#allocation7 + $0x30] sm:$0xf]
        %v777 = vld [vmem:[#allocation7 + $0x34] sm:$0xf]
        %v778 = vld [vmem:[#allocation7 + $0x38] sm:$0xf]
        %v779 = vld [vmem:[#allocation7 + $0x3c] sm:$0xf]
        %v780 = vld [vmem:[%s6] sm:$0x1]
        %v782 = vlaneseq
        %v783 = vshrl.u32 %v782, 7
        %v784 = vsub.s32 0, %v783
        %v785 = vrot.slane %v780, %v784
        %v803 = vunpack.c.l.b16 %v764
        %v804 = vunpack.c.l.b16 %v765
        %v805 = vunpack.c.l.b16 %v766
        %v806 = vunpack.c.l.b16 %v767
        %v807 = vunpack.c.l.b16 %v768
        %v808 = vunpack.c.l.b16 %v769
        %v809 = vunpack.c.l.b16 %v770
        %v810 = vunpack.c.l.b16 %v771
        %v811 = vunpack.c.l.b16 %v772
        %v812 = vunpack.c.l.b16 %v773
        %v813 = vunpack.c.l.b16 %v774
        %v814 = vunpack.c.l.b16 %v775
        %v815 = vunpack.c.l.b16 %v776
        %v816 = vunpack.c.l.b16 %v777
        %v817 = vunpack.c.l.b16 %v778
        %v818 = vunpack.c.l.b16 %v779
        %v819 = vpack.c.b16 %v804, %v803
        %v820 = vpack.c.b16 %v806, %v805
        %v821 = vpack.c.b16 %v808, %v807
        %v822 = vpack.c.b16 %v810, %v809
        %v823 = vpack.c.b16 %v812, %v811
        %v824 = vpack.c.b16 %v814, %v813
        %v825 = vpack.c.b16 %v816, %v815
        %v826 = vpack.c.b16 %v818, %v817
        %835 = vmatprep.subr.bf16.mxu0 0
        %836 = vmatpush1.bf16.msra.mxu0 %v826
        %837 = vmatprep.subr.bf16.mxu0 0
        %838 = vmatpush1.bf16.msra.mxu0 %v825
        %839 = vmatprep.subr.bf16.mxu0 0
        %840 = vmatpush1.bf16.msra.mxu0 %v824
        %841 = vmatprep.subr.bf16.mxu0 0
        %842 = vmatpush1.bf16.msra.mxu0 %v823
        %843 = vmatprep.subr.bf16.mxu0 0
        %844 = vmatpush1.bf16.msra.mxu0 %v822
        %845 = vmatprep.subr.bf16.mxu0 0
        %846 = vmatpush1.bf16.msra.mxu0 %v821
        %847 = vmatprep.subr.bf16.mxu0 0
        %848 = vmatpush1.bf16.msra.mxu0 %v820
        %849 = vmatprep.subr.bf16.mxu0 0
        %850 = vmatpush1.bf16.msra.mxu0 %v819
        %851 = vmatprep.subr.bf16.mxu0 0
        %852 = vmatpush2.bf16.msra.mxu0 0
        %853 = vmatprep.subr.bf16.mxu0 0
        %854 = vmatpush2.bf16.msra.mxu0 0
        %855 = vmatprep.subr.bf16.mxu0 0
        %856 = vmatpush2.bf16.msra.mxu0 0
        %857 = vmatprep.subr.bf16.mxu0 0
        %858 = vmatpush2.bf16.msra.mxu0 0
        %859 = vmatprep.subr.bf16.mxu0 0
        %860 = vmatpush2.bf16.msra.mxu0 0
        %861 = vmatprep.subr.bf16.mxu0 0
        %862 = vmatpush2.bf16.msra.mxu0 0
        %863 = vmatprep.subr.bf16.mxu0 0
        %864 = vmatpush2.bf16.msra.mxu0 0
        %865 = vmatprep.subr.bf16.mxu0 0
        %866 = vmatpush2.bf16.msra.mxu0 0
        %867 = vmatprep.mubr.bf16.mxu0 0
        %868 = vmatmul.mubr.bf16.gmra.mxu0 %v763
        %v869 = vpop.f32.mrf.mxu0
        %v870 = vadd.f32 %v785, %v869
        %v871 = vpop.f32.mrf.mxu0
        %v872 = vpop.f32.mrf.mxu0
        %v873 = vpop.f32.mrf.mxu0
        %874 = vdwg.mxu0
        %v875 = vld [vmem:[%s391] sm:$0xff]
        %877 = vset.pattern.permute.xlu0 0
        %878 = vperm.xlu0 %877, %v875
        %v879 = vpop.permute.xlu0 %878
        %v881 = vmul.f32 %v870, %v879
        %882 = vst [vmem:[%s376] sm:$0xff] %v881
        %vm883 = vcmask 60416
        %884 = vst.msk [vmem:[%s383] sm:$0xf] %vm883, %v715
        %s885 = sand.u32 %s200, 1
        %s886 = scalar_lea.sflag [#allocation4], %s885
        %s887 = sand.u32 %s200, 1
        %s888 = smul.addr %s887, 8
        %s889 = scalar_lea.vmem [#allocation8], %s888
        %s890 = sand.u32 %s226, 1
        %s891 = scalar_lea.sflag [#allocation10], %s890
        %s892 = sand.u32 %s226, 1
        %s893 = smul.addr %s892, 4
        %s894 = scalar_lea.vmem [#allocation9], %s893
        // Predicated region
        $region61: #{tpu_custom_call.1} parent=47 // pred_check
          %p895 = pneg %p210
        $region62: #{tpu_custom_call.1} parent=47 // pred_check_branch
          %897 = sbr.rel (%p895) target = $region64
        $region63: #{tpu_custom_call.1} parent=47 // pred_region
          %s899 = ssub.s32 128, 128
          %900 = vsyncadd %s886, %s899
          %s901 = smul.addr %s30, 128
          %s902 = scalar_lea.hbm %s7, %s901
          %s904 = sshll.u32 %s889, 4
          %s905 = int_to_ptr.vmem [resolvable:$true] %s904
          %907 = dma.vmem_to_hbm [thread:$0]  %s905, 128, %s902, %s886
        $region64: #{tpu_custom_call.1} parent=47 // pred_fallthru
          _
        // Predicated region
        $region65: #{tpu_custom_call.1} parent=47 // pred_check
          %p908 = pneg %p236
        $region66: #{tpu_custom_call.1} parent=47 // pred_check_branch
          %910 = sbr.rel (%p908) target = $region68
        $region67: #{tpu_custom_call.1} parent=47 // pred_region
          %s912 = ssub.s32 64, 64
          %913 = vsyncadd %s891, %s912
          %s914 = smul.addr %s30, 64
          %s915 = scalar_lea.hbm %s8, %s914
          %s917 = sshll.u32 %s894, 4
          %s918 = int_to_ptr.vmem [resolvable:$true] %s917
          %920 = dma.vmem_to_hbm [thread:$0]  %s918, 64, %s915, %s891
        $region68: #{tpu_custom_call.1} parent=47 // pred_fallthru
          _
      $region48: #{tpu_custom_call.1} parent=5 // pred_fallthru
        _
      %p921 = scmp.le.s32.totalorder 2, %s25
      // Predicated region
      $region69: #{tpu_custom_call.1} parent=5 // pred_check
        %p922 = pneg %p921
      $region70: #{tpu_custom_call.1} parent=5 // pred_check_branch
        %924 = sbr.rel (%p922) target = $region72
      $region71: #{tpu_custom_call.1} parent=5 // pred_region
        %s925 = ssub.s32 %s25, 2
        // Predicated region
        $region73: #{tpu_custom_call.1} parent=71 // pred_check
          %p926 = pneg %p216
        $region74: #{tpu_custom_call.1} parent=71 // pred_check_branch
          %928 = sbr.rel (%p926) target = $region76
        $region75: #{tpu_custom_call.1} parent=71 // pred_region
          %s929 = sand.u32 %s201, 1
          %s930 = scalar_lea.sflag [#allocation4], %s929
          %s931 = sand.u32 %s201, 1
          %s932 = smul.addr %s931, 8
          %s933 = scalar_lea.vmem [#allocation8], %s932
          %934 = dma.done %s930, 128
        $region76: #{tpu_custom_call.1} parent=71 // pred_fallthru
          _
        // Predicated region
        $region77: #{tpu_custom_call.1} parent=71 // pred_check
          %p935 = pneg %p242
        $region78: #{tpu_custom_call.1} parent=71 // pred_check_branch
          %937 = sbr.rel (%p935) target = $region80
        $region79: #{tpu_custom_call.1} parent=71 // pred_region
          %s938 = sand.u32 %s227, 1
          %s939 = scalar_lea.sflag [#allocation10], %s938
          %s940 = sand.u32 %s227, 1
          %s941 = smul.addr %s940, 4
          %s942 = scalar_lea.vmem [#allocation9], %s941
          %943 = dma.done %s939, 64
        $region80: #{tpu_custom_call.1} parent=71 // pred_fallthru
          _
      $region72: #{tpu_custom_call.1} parent=5 // pred_fallthru
        _
    $region6: #{tpu_custom_call.1} parent=1 // loop_footer
      %s29 = sadd.s32 1, %s25
    $region7: #{tpu_custom_call.1} parent=1 // loop_footer_branch
      %24 = sbr.rel target = $region3
    $region8: #{tpu_custom_call.1} parent=1 // loop_exit
      _
    %944 = vsyncpa [#allocation3], 1
    %s945 = scalar_lea.sflag [#allocation3], 1
    %946 = vsyncpa %s945, 1
    %947 = vsyncpa [#allocation6], 1
    %948 = vsyncpa [#allocation4], 1
    %s949 = scalar_lea.sflag [#allocation4], 1
    %950 = vsyncpa %s949, 1
    %951 = vsyncpa [#allocation10], 1
    %s952 = scalar_lea.sflag [#allocation10], 1
    %953 = vsyncpa %s952, 1

// kernel: tpu_custom_call.1
$region0: #{tpu_custom_call.1}
  #allocation0 [shape = 'u32[]', space=smem, size = 0x4, offset = 0x4, fixed_abs, tag = 'smem constant byte address 0x4 - core index']
  #allocation1 [shape = 'u32[144,128]{1,0:T(1,128)}', space=vmem, size = 0x12000, scoped, tag = 'internal scratch']
  %s0 = inlined_call_operand.vmem [shape: f32[2,8,128], index: 0, kind: input, shape index: {}]
  %s1 = inlined_call_operand.hbm [shape: f32[2,1,8], index: 1, kind: input, shape index: {}]
  %s2 = inlined_call_operand.vmem [shape: f32[2,8,1], index: 2, kind: input, shape index: {}]
  %s3 = inlined_call_operand.hbm [shape: bf16[128,384], index: 3, kind: input, shape index: {}]
  %s4 = inlined_call_operand.vmem [shape: f32[1,384], index: 4, kind: input, shape index: {}]
  %s5 = inlined_call_operand.hbm [shape: bf16[128,128], index: 5, kind: input, shape index: {}]
  %s6 = inlined_call_operand.vmem [shape: f32[1,128], index: 6, kind: input, shape index: {}]
  %s7 = inlined_call_operand.hbm [shape: f32[2,8,128], index: 7, kind: output, shape index: {0}]
  %s8 = inlined_call_operand.hbm [shape: bf16[2,8,8], index: 8, kind: output, shape index: {1}]
  %9 = xla_tuple %s7, %s8
  %s10 = sld [smem:[#allocation0]]
  $region81: #{tpu_custom_call.1} parent=0
    _
  %s12 = ssub.s32 1, %s10
  %s13 = scalar_select 0, %s12, %s10
  $region1: #{tpu_custom_call.1} parent=0
    #allocation2 [shape = 'u8[1024]{0}', space=vmem, size = 0x400, scoped, tag = 'input window, operand 1']
    #allocation3 [shape = 's32[2]{0}', space=sflag, size = 0x8, scoped, tag = 'scoped memory for tpu_custom_call.1']
    #allocation4 [shape = 's32[2]{0}', space=sflag, size = 0x8, scoped, tag = 'scoped memory for tpu_custom_call.1']
    #allocation5 [shape = 'u8[98304]{0}', space=vmem, size = 0x18000, scoped, tag = 'input window, operand 3, single buffered']
    #allocation6 [shape = 's32[1]{0}', space=sflag, size = 0x4, scoped, tag = 'scoped memory for tpu_custom_call.1']
    #allocation7 [shape = 'u8[32768]{0}', space=vmem, size = 0x8000, scoped, tag = 'input window, operand 5, single buffered']
    #allocation8 [shape = 'u8[8192]{0}', space=vmem, size = 0x2000, scoped, tag = 'output window, operand 0']
    #allocation9 [shape = 'u8[4096]{0}', space=vmem, size = 0x1000, scoped, tag = 'output window, operand 1']
    #allocation10 [shape = 's32[2]{0}', space=sflag, size = 0x8, scoped, tag = 'scoped memory for tpu_custom_call.1']
    %14 = vsyncpa [#allocation3], 0
    %s15 = scalar_lea.sflag [#allocation3], 1
    %16 = vsyncpa %s15, 0
    %17 = vsyncpa [#allocation6], 0
    %18 = vsyncpa [#allocation4], 0
    %s19 = scalar_lea.sflag [#allocation4], 1
    %20 = vsyncpa %s19, 0
    %21 = vsyncpa [#allocation10], 0
    %s22 = scalar_lea.sflag [#allocation10], 1
    %23 = vsyncpa %s22, 0
    loop: start=0, step=1, limit=4
    $region2: #{tpu_custom_call.1} parent=1 // loop_pre_header
      _
    $region3: #{tpu_custom_call.1} parent=1 // loop_header
      %s25 = sphi 0, %s29
      %p26 = scmp.ge.s32.totalorder %s25, 4
      %s35 = sphi 0, %s37
      %s38 = sphi 0, %s35
      %s39 = sphi 0, %s38
      %s55 = sphi 0, %s39
      %s61 = sphi 0, %s63
      %s64 = sphi 0, %s61
      %s65 = sphi 0, %s64
      %s81 = sphi 0, %s65
      %s87 = sphi 0, %s89
      %s90 = sphi 0, %s87
      %s91 = sphi 0, %s90
      %s107 = sphi 0, %s91
      %s111 = sphi 0, %s111
      %s113 = sphi 0, %s111
      %s114 = sphi 0, %s113
      %s128 = sphi 0, %s114
      %s132 = sphi 0, %s132
      %s134 = sphi 0, %s132
      %s135 = sphi 0, %s134
      %s149 = sphi 0, %s135
      %s153 = sphi 0, %s153
      %s155 = sphi 0, %s153
      %s156 = sphi 0, %s155
      %s170 = sphi 0, %s156
      %s174 = sphi 0, %s174
      %s176 = sphi 0, %s174
      %s177 = sphi 0, %s176
      %s191 = sphi 0, %s177
      %s197 = sphi 0, %s199
      %s200 = sphi 0, %s197
      %s201 = sphi 0, %s200
      %s217 = sphi 0, %s201
      %s223 = sphi 0, %s225
      %s226 = sphi 0, %s223
      %s227 = sphi 0, %s226
      %s243 = sphi 0, %s227
    $region4: #{tpu_custom_call.1} parent=1 // loop_header_branch
      %28 = sbr.rel (%p26) target = $region8
    $region5: #{tpu_custom_call.1} parent=1 // loop_body
      %s30 = ssub.s32 %s25, 1
      %s31 = ssub.s32 %s25, 2
      %s32 = sadd.s32 %s25, 1
      %s33 = ssub.s32 %s25, %s32
      %p34 = scmp.eq.s32.totalorder %s33, 0
      %s36 = sadd.s32 %s35, 1
      %s37 = scalar_select %p34, %s35, %s36
      %p40 = pneg %p34
      %p41 = scmp.eq.s32.totalorder %s25, 1
      %p42 = por %p40, %p41
      %p43 = scmp.ne.s32.totalorder %s35, %s38
      %p44 = scmp.eq.s32.totalorder %s25, 0
      %p45 = por %p43, %p44
      %p46 = scmp.ne.s32.totalorder %s35, %s38
      %p47 = scmp.eq.s32.totalorder %s30, 1
      %p48 = por %p46, %p47
      %p49 = scmp.ne.s32.totalorder %s38, %s39
      %p50 = scmp.eq.s32.totalorder %s30, 0
      %p51 = por %p49, %p50
      %p52 = scmp.ne.s32.totalorder %s38, %s39
      %p53 = scmp.eq.s32.totalorder %s31, 1
      %p54 = por %p52, %p53
      %p56 = scmp.ne.s32.totalorder %s39, %s55
      %p57 = scmp.eq.s32.totalorder %s31, 0
      %p58 = por %p56, %p57
      %s59 = ssub.s32 %s25, %s32
      %p60 = scmp.eq.s32.totalorder %s59, 0
      %s62 = sadd.s32 %s61, 1
      %s63 = scalar_select %p60, %s61, %s62
      %p66 = pneg %p60
      %p67 = scmp.eq.s32.totalorder %s25, 1
      %p68 = por %p66, %p67
      %p69 = scmp.ne.s32.totalorder %s61, %s64
      %p70 = scmp.eq.s32.totalorder %s25, 0
      %p71 = por %p69, %p70
      %p72 = scmp.ne.s32.totalorder %s61, %s64
      %p73 = scmp.eq.s32.totalorder %s30, 1
      %p74 = por %p72, %p73
      %p75 = scmp.ne.s32.totalorder %s64, %s65
      %p76 = scmp.eq.s32.totalorder %s30, 0
      %p77 = por %p75, %p76
      %p78 = scmp.ne.s32.totalorder %s64, %s65
      %p79 = scmp.eq.s32.totalorder %s31, 1
      %p80 = por %p78, %p79
      %p82 = scmp.ne.s32.totalorder %s65, %s81
      %p83 = scmp.eq.s32.totalorder %s31, 0
      %p84 = por %p82, %p83
      %s85 = ssub.s32 %s25, %s32
      %p86 = scmp.eq.s32.totalorder %s85, 0
      %s88 = sadd.s32 %s87, 1
      %s89 = scalar_select %p86, %s87, %s88
      %p92 = pneg %p86
      %p93 = scmp.eq.s32.totalorder %s25, 1
      %p94 = por %p92, %p93
      %p95 = scmp.ne.s32.totalorder %s87, %s90
      %p96 = scmp.eq.s32.totalorder %s25, 0
      %p97 = por %p95, %p96
      %p98 = scmp.ne.s32.totalorder %s87, %s90
      %p99 = scmp.eq.s32.totalorder %s30, 1
      %p100 = por %p98, %p99
      %p101 = scmp.ne.s32.totalorder %s90, %s91
      %p102 = scmp.eq.s32.totalorder %s30, 0
      %p103 = por %p101, %p102
      %p104 = scmp.ne.s32.totalorder %s90, %s91
      %p105 = scmp.eq.s32.totalorder %s31, 1
      %p106 = por %p104, %p105
      %p108 = scmp.ne.s32.totalorder %s91, %s107
      %p109 = scmp.eq.s32.totalorder %s31, 0
      %p110 = por %p108, %p109
      %s112 = sadd.s32 %s111, 1
      %p115 = scmp.eq.s32.totalorder %s25, 1
      %p116 = scmp.ne.s32.totalorder %s111, %s113
      %p117 = scmp.eq.s32.totalorder %s25, 0
      %p118 = por %p116, %p117
      %p119 = scmp.ne.s32.totalorder %s111, %s113
      %p120 = scmp.eq.s32.totalorder %s30, 1
      %p121 = por %p119, %p120
      %p122 = scmp.ne.s32.totalorder %s113, %s114
      %p123 = scmp.eq.s32.totalorder %s30, 0
      %p124 = por %p122, %p123
      %p125 = scmp.ne.s32.totalorder %s113, %s114
      %p126 = scmp.eq.s32.totalorder %s31, 1
      %p127 = por %p125, %p126
      %p129 = scmp.ne.s32.totalorder %s114, %s128
      %p130 = scmp.eq.s32.totalorder %s31, 0
      %p131 = por %p129, %p130
      %s133 = sadd.s32 %s132, 1
      %p136 = scmp.eq.s32.totalorder %s25, 1
      %p137 = scmp.ne.s32.totalorder %s132, %s134
      %p138 = scmp.eq.s32.totalorder %s25, 0
      %p139 = por %p137, %p138
      %p140 = scmp.ne.s32.totalorder %s132, %s134
      %p141 = scmp.eq.s32.totalorder %s30, 1
      %p142 = por %p140, %p141
      %p143 = scmp.ne.s32.totalorder %s134, %s135
      %p144 = scmp.eq.s32.totalorder %s30, 0
      %p145 = por %p143, %p144
      %p146 = scmp.ne.s32.totalorder %s134, %s135
      %p147 = scmp.eq.s32.totalorder %s31, 1
      %p148 = por %p146, %p147
      %p150 = scmp.ne.s32.totalorder %s135, %s149
      %p151 = scmp.eq.s32.totalorder %s31, 0
      %p152 = por %p150, %p151
      %s154 = sadd.s32 %s153, 1
      %p157 = scmp.eq.s32.totalorder %s25, 1
      %p158 = scmp.ne.s32.totalorder %s153, %s155
      %p159 = scmp.eq.s32.totalorder %s25, 0
      %p160 = por %p158, %p159
      %p161 = scmp.ne.s32.totalorder %s153, %s155
      %p162 = scmp.eq.s32.totalorder %s30, 1
      %p163 = por %p161, %p162
      %p164 = scmp.ne.s32.totalorder %s155, %s156
      %p165 = scmp.eq.s32.totalorder %s30, 0
      %p166 = por %p164, %p165
      %p167 = scmp.ne.s32.totalorder %s155, %s156
      %p168 = scmp.eq.s32.totalorder %s31, 1
      %p169 = por %p167, %p168
      %p171 = scmp.ne.s32.totalorder %s156, %s170
      %p172 = scmp.eq.s32.totalorder %s31, 0
      %p173 = por %p171, %p172
      %s175 = sadd.s32 %s174, 1
      %p178 = scmp.eq.s32.totalorder %s25, 1
      %p179 = scmp.ne.s32.totalorder %s174, %s176
      %p180 = scmp.eq.s32.totalorder %s25, 0
      %p181 = por %p179, %p180
      %p182 = scmp.ne.s32.totalorder %s174, %s176
      %p183 = scmp.eq.s32.totalorder %s30, 1
      %p184 = por %p182, %p183
      %p185 = scmp.ne.s32.totalorder %s176, %s177
      %p186 = scmp.eq.s32.totalorder %s30, 0
      %p187 = por %p185, %p186
      %p188 = scmp.ne.s32.totalorder %s176, %s177
      %p189 = scmp.eq.s32.totalorder %s31, 1
      %p190 = por %p188, %p189
      %p192 = scmp.ne.s32.totalorder %s177, %s191
      %p193 = scmp.eq.s32.totalorder %s31, 0
      %p194 = por %p192, %p193
      %s195 = ssub.s32 %s25, %s32
      %p196 = scmp.eq.s32.totalorder %s195, 0
      %s198 = sadd.s32 %s197, 1
      %s199 = scalar_select %p196, %s197, %s198
      %p202 = pneg %p196
      %p203 = scmp.eq.s32.totalorder %s25, 1
      %p204 = por %p202, %p203
      %p205 = scmp.ne.s32.totalorder %s197, %s200
      %p206 = scmp.eq.s32.totalorder %s25, 0
      %p207 = por %p205, %p206
      %p208 = scmp.ne.s32.totalorder %s197, %s200
      %p209 = scmp.eq.s32.totalorder %s30, 1
      %p210 = por %p208, %p209
      %p211 = scmp.ne.s32.totalorder %s200, %s201
      %p212 = scmp.eq.s32.totalorder %s30, 0
      %p213 = por %p211, %p212
      %p214 = scmp.ne.s32.totalorder %s200, %s201
      %p215 = scmp.eq.s32.totalorder %s31, 1
      %p216 = por %p214, %p215
      %p218 = scmp.ne.s32.totalorder %s201, %s217
      %p219 = scmp.eq.s32.totalorder %s31, 0
      %p220 = por %p218, %p219
      %s221 = ssub.s32 %s25, %s32
      %p222 = scmp.eq.s32.totalorder %s221, 0
      %s224 = sadd.s32 %s223, 1
      %s225 = scalar_select %p222, %s223, %s224
      %p228 = pneg %p222
      %p229 = scmp.eq.s32.totalorder %s25, 1
      %p230 = por %p228, %p229
      %p231 = scmp.ne.s32.totalorder %s223, %s226
      %p232 = scmp.eq.s32.totalorder %s25, 0
      %p233 = por %p231, %p232
      %p234 = scmp.ne.s32.totalorder %s223, %s226
      %p235 = scmp.eq.s32.totalorder %s30, 1
      %p236 = por %p234, %p235
      %p237 = scmp.ne.s32.totalorder %s226, %s227
      %p238 = scmp.eq.s32.totalorder %s30, 0
      %p239 = por %p237, %p238
      %p240 = scmp.ne.s32.totalorder %s226, %s227
      %p241 = scmp.eq.s32.totalorder %s31, 1
      %p242 = por %p240, %p241
      %p244 = scmp.ne.s32.totalorder %s227, %s243
      %p245 = scmp.eq.s32.totalorder %s31, 0
      %p246 = por %p244, %p245
      %p247 = scmp.le.s32.totalorder 1, %s25
      %p248 = scmp.lt.s32.totalorder %s25, 3
      %p249 = pnand %p247, %p248
      %p250 = pneg %p249
      // Predicated region
      $region9: #{tpu_custom_call.1} parent=5 // pred_check
        _
      $region10: #{tpu_custom_call.1} parent=5 // pred_check_branch
        %252 = sbr.rel (%p249) target = $region12
      $region11: #{tpu_custom_call.1} parent=5 // pred_region
        %s253 = ssub.s32 %s25, 1
        // Predicated region
        $region13: #{tpu_custom_call.1} parent=11 // pred_check
          %p254 = pneg %p124
        $region14: #{tpu_custom_call.1} parent=11 // pred_check_branch
          %256 = sbr.rel (%p254) target = $region16
        $region15: #{tpu_custom_call.1} parent=11 // pred_region
          %s258 = ssub.s32 3072, 3072
          %259 = vsyncadd [#allocation6], %s258
          %s260 = sshll.u32 [#allocation5], 4
          %s261 = int_to_ptr.vmem [resolvable:$true] %s260
          %266 = dma.hbm_to_vmem [thread:$0]  %s3, 3072, %s261, [#allocation6], 192, 192, 12
        $region16: #{tpu_custom_call.1} parent=11 // pred_fallthru
          _
        // Predicated region
        $region17: #{tpu_custom_call.1} parent=11 // pred_check
          %p267 = pneg %p145
        $region18: #{tpu_custom_call.1} parent=11 // pred_check_branch
          %269 = sbr.rel (%p267) target = $region20
        $region19: #{tpu_custom_call.1} parent=11 // pred_region
          _
        $region20: #{tpu_custom_call.1} parent=11 // pred_fallthru
          _
        // Predicated region
        $region21: #{tpu_custom_call.1} parent=11 // pred_check
          %p270 = pneg %p166
        $region22: #{tpu_custom_call.1} parent=11 // pred_check_branch
          %272 = sbr.rel (%p270) target = $region24
        $region23: #{tpu_custom_call.1} parent=11 // pred_region
          %s274 = ssub.s32 1024, 1024
          %275 = vsyncadd [#allocation6], %s274
          %s276 = sshll.u32 [#allocation7], 4
          %s277 = int_to_ptr.vmem [resolvable:$true] %s276
          %282 = dma.hbm_to_vmem [thread:$0]  %s5, 1024, %s277, [#allocation6], 64, 64, 4
        $region24: #{tpu_custom_call.1} parent=11 // pred_fallthru
          _
        // Predicated region
        $region25: #{tpu_custom_call.1} parent=11 // pred_check
          %p283 = pneg %p187
        $region26: #{tpu_custom_call.1} parent=11 // pred_check_branch
          %285 = sbr.rel (%p283) target = $region28
        $region27: #{tpu_custom_call.1} parent=11 // pred_region
          _
        $region28: #{tpu_custom_call.1} parent=11 // pred_fallthru
          _
      $region12: #{tpu_custom_call.1} parent=5 // pred_fallthru
        _
      %p286 = scmp.lt.s32.totalorder %s25, 2
      // Predicated region
      $region29: #{tpu_custom_call.1} parent=5 // pred_check
        %p287 = pneg %p286
      $region30: #{tpu_custom_call.1} parent=5 // pred_check_branch
        %289 = sbr.rel (%p287) target = $region32
      $region31: #{tpu_custom_call.1} parent=5 // pred_region
        // Predicated region
        $region33: #{tpu_custom_call.1} parent=31 // pred_check
          %p290 = pneg %p45
        $region34: #{tpu_custom_call.1} parent=31 // pred_check_branch
          %292 = sbr.rel (%p290) target = $region36
        $region35: #{tpu_custom_call.1} parent=31 // pred_region
          %p293 = scmp.lt.s32.totalorder %s25, 1
          %s294 = scalar_select %p293, %s25, 1
          %s295 = smul.addr %s294, 8
          %s296 = scalar_lea.vmem %s0, %s295
        $region36: #{tpu_custom_call.1} parent=31 // pred_fallthru
          _
        // Predicated region
        $region37: #{tpu_custom_call.1} parent=31 // pred_check
          %p297 = pneg %p71
        $region38: #{tpu_custom_call.1} parent=31 // pred_check_branch
          %299 = sbr.rel (%p297) target = $region40
        $region39: #{tpu_custom_call.1} parent=31 // pred_region
          %s300 = sand.u32 %s61, 1
          %s301 = scalar_lea.sflag [#allocation3], %s300
          %s302 = sand.u32 %s61, 1
          %s303 = scalar_lea.vmem [#allocation2], %s302
          %s305 = ssub.s32 16, 16
          %306 = vsyncadd %s301, %s305
          %s307 = smul.addr %s25, 16
          %s308 = scalar_lea.hbm %s1, %s307
          %s310 = sshll.u32 %s303, 4
          %s311 = int_to_ptr.vmem [resolvable:$true] %s310
          %313 = dma.hbm_to_vmem [thread:$0]  %s308, 16, %s311, %s301
        $region40: #{tpu_custom_call.1} parent=31 // pred_fallthru
          _
        // Predicated region
        $region41: #{tpu_custom_call.1} parent=31 // pred_check
          %p314 = pneg %p97
        $region42: #{tpu_custom_call.1} parent=31 // pred_check_branch
          %316 = sbr.rel (%p314) target = $region44
        $region43: #{tpu_custom_call.1} parent=31 // pred_region
          %p317 = scmp.lt.s32.totalorder %s25, 1
          %s318 = scalar_select %p317, %s25, 1
          %s319 = smul.addr %s318, 8
          %s320 = scalar_lea.vmem %s2, %s319
        $region44: #{tpu_custom_call.1} parent=31 // pred_fallthru
          _
      $region32: #{tpu_custom_call.1} parent=5 // pred_fallthru
        _
      %p321 = scmp.le.s32.totalorder 1, %s25
      %p322 = scmp.lt.s32.totalorder %s25, 3
      %p323 = pnand %p321, %p322
      %p324 = pneg %p323
      // Predicated region
      $region45: #{tpu_custom_call.1} parent=5 // pred_check
        _
      $region46: #{tpu_custom_call.1} parent=5 // pred_check_branch
        %326 = sbr.rel (%p323) target = $region48
      $region47: #{tpu_custom_call.1} parent=5 // pred_region
        %s327 = ssub.s32 %s25, 1
        %s328 = sand.u32 %s64, 1
        %s329 = scalar_lea.sflag [#allocation3], %s328
        %s330 = sand.u32 %s64, 1
        %s331 = scalar_lea.vmem [#allocation2], %s330
        // Predicated region
        $region49: #{tpu_custom_call.1} parent=47 // pred_check
          %p332 = pneg %p77
        $region50: #{tpu_custom_call.1} parent=47 // pred_check_branch
          %334 = sbr.rel (%p332) target = $region52
        $region51: #{tpu_custom_call.1} parent=47 // pred_region
          %335 = dma.done %s329, 16
        $region52: #{tpu_custom_call.1} parent=47 // pred_fallthru
          _
        // Predicated region
        $region53: #{tpu_custom_call.1} parent=47 // pred_check
          %p336 = pneg %p124
        $region54: #{tpu_custom_call.1} parent=47 // pred_check_branch
          %338 = sbr.rel (%p336) target = $region56
        $region55: #{tpu_custom_call.1} parent=47 // pred_region
          %339 = dma.done [#allocation6], 3072
        $region56: #{tpu_custom_call.1} parent=47 // pred_fallthru
          _
        // Predicated region
        $region57: #{tpu_custom_call.1} parent=47 // pred_check
          %p340 = pneg %p166
        $region58: #{tpu_custom_call.1} parent=47 // pred_check_branch
          %342 = sbr.rel (%p340) target = $region60
        $region59: #{tpu_custom_call.1} parent=47 // pred_region
          %343 = dma.done [#allocation6], 1024
        $region60: #{tpu_custom_call.1} parent=47 // pred_fallthru
          _
        %p344 = scmp.lt.s32.totalorder %s30, 1
        %s345 = scalar_select %p344, %s30, 1
        %s346 = smul.addr %s345, 8
        %s347 = scalar_lea.vmem %s0, %s346
        %p348 = pneg %p51
        %p349 = pneg %p48
        %s350 = sand.u32 %s64, 1
        %s351 = scalar_lea.sflag [#allocation3], %s350
        %s352 = sand.u32 %s64, 1
        %s353 = scalar_lea.vmem [#allocation2], %s352
        %p354 = pneg %p77
        %p355 = pneg %p74
        %p356 = scmp.lt.s32.totalorder %s30, 1
        %s357 = scalar_select %p356, %s30, 1
        %s358 = smul.addr %s357, 8
        %s359 = scalar_lea.vmem %s2, %s358
        %p360 = pneg %p103
        %p361 = pneg %p100
        %p362 = pneg %p124
        %p363 = pneg %p121
        %p364 = pneg %p145
        %p365 = pneg %p142
        %p366 = pneg %p166
        %p367 = pneg %p163
        %p368 = pneg %p187
        %p369 = pneg %p184
        %p370 = pneg %p213
        %p371 = pneg %p210
        %s372 = sand.u32 %s200, 1
        %s373 = scalar_lea.sflag [#allocation4], %s372
        %s374 = sand.u32 %s200, 1
        %s375 = smul.addr %s374, 8
        %s376 = scalar_lea.vmem [#allocation8], %s375
        %p377 = pneg %p239
        %p378 = pneg %p236
        %s379 = sand.u32 %s226, 1
        %s380 = scalar_lea.sflag [#allocation10], %s379
        %s381 = sand.u32 %s226, 1
        %s382 = smul.addr %s381, 4
        %s383 = scalar_lea.vmem [#allocation9], %s382
        %p384 = scmp.lt.s32.totalorder %s30, 1
        %s385 = scalar_select %p384, %s30, 1
        %s386 = smul.addr %s385, 8
        %s387 = scalar_lea.vmem %s0, %s386
        %p388 = scmp.lt.s32.totalorder %s30, 1
        %s389 = scalar_select %p388, %s30, 1
        %s390 = smul.addr %s389, 8
        %s391 = scalar_lea.vmem %s2, %s390
        %v393 = vld [vmem:[%s387] sm:$0xff]
        %v394 = vpack.c.bf16 %v393, %v393
        %v395 = vld [vmem:[#allocation5] sm:$0xff]
        %v396 = vld [vmem:[#allocation5 + $0x8] sm:$0xf]
        %v397 = vld [vmem:[#allocation5 + $0xc] sm:$0xff]
        %v398 = vld [vmem:[#allocation5 + $0x14] sm:$0xf]
        %v399 = vld [vmem:[#allocation5 + $0x18] sm:$0xff]
        %v400 = vld [vmem:[#allocation5 + $0x20] sm:$0xf]
        %v401 = vld [vmem:[#allocation5 + $0x24] sm:$0xff]
        %v402 = vld [vmem:[#allocation5 + $0x2c] sm:$0xf]
        %v403 = vld [vmem:[#allocation5 + $0x30] sm:$0xff]
        %v404 = vld [vmem:[#allocation5 + $0x38] sm:$0xf]
        %v405 = vld [vmem:[#allocation5 + $0x3c] sm:$0xff]
        %v406 = vld [vmem:[#allocation5 + $0x44] sm:$0xf]
        %v407 = vld [vmem:[#allocation5 + $0x48] sm:$0xff]
        %v408 = vld [vmem:[#allocation5 + $0x50] sm:$0xf]
        %v409 = vld [vmem:[#allocation5 + $0x54] sm:$0xff]
        %v410 = vld [vmem:[#allocation5 + $0x5c] sm:$0xf]
        %v411 = vld [vmem:[#allocation5 + $0x60] sm:$0xff]
        %v412 = vld [vmem:[#allocation5 + $0x68] sm:$0xf]
        %v413 = vld [vmem:[#allocation5 + $0x6c] sm:$0xff]
        %v414 = vld [vmem:[#allocation5 + $0x74] sm:$0xf]
        %v415 = vld [vmem:[#allocation5 + $0x78] sm:$0xff]
        %v416 = vld [vmem:[#allocation5 + $0x80] sm:$0xf]
        %v417 = vld [vmem:[#allocation5 + $0x84] sm:$0xff]
        %v418 = vld [vmem:[#allocation5 + $0x8c] sm:$0xf]
        %v419 = vld [vmem:[#allocation5 + $0x90] sm:$0xff]
        %v420 = vld [vmem:[#allocation5 + $0x98] sm:$0xf]
        %v421 = vld [vmem:[#allocation5 + $0x9c] sm:$0xff]
        %v422 = vld [vmem:[#allocation5 + $0xa4] sm:$0xf]
        %v423 = vld [vmem:[#allocation5 + $0xa8] sm:$0xff]
        %v424 = vld [vmem:[#allocation5 + $0xb0] sm:$0xf]
        %v425 = vld [vmem:[#allocation5 + $0xb4] sm:$0xff]
        %v426 = vld [vmem:[#allocation5 + $0xbc] sm:$0xf]
        %v427 = vld [vmem:[%s4] sm:$0x7]
        %v429 = vlaneseq
        %v430 = vshrl.u32 %v429, 7
        %v431 = vsub.s32 0, %v430
        %v432 = vrot.slane %v427, %v431
        %v433 = vlaneseq
        %v434 = vshrl.u32 %v433, 7
        %v435 = vsub.s32 1, %v434
        %v436 = vrot.slane %v427, %v435
        %v437 = vlaneseq
        %v438 = vshrl.u32 %v437, 7
        %v439 = vsub.s32 2, %v438
        %v440 = vrot.slane %v427, %v439
        %v476 = vunpack.c.l.b16 %v395
        %v477 = vunpack.c.h.b16 %v395
        %v478 = vunpack.c.l.b16 %v396
        %v479 = vunpack.c.l.b16 %v397
        %v480 = vunpack.c.h.b16 %v397
        %v481 = vunpack.c.l.b16 %v398
        %v482 = vunpack.c.l.b16 %v399
        %v483 = vunpack.c.h.b16 %v399
        %v484 = vunpack.c.l.b16 %v400
        %v485 = vunpack.c.l.b16 %v401
        %v486 = vunpack.c.h.b16 %v401
        %v487 = vunpack.c.l.b16 %v402
        %v488 = vunpack.c.l.b16 %v403
        %v489 = vunpack.c.h.b16 %v403
        %v490 = vunpack.c.l.b16 %v404
        %v491 = vunpack.c.l.b16 %v405
        %v492 = vunpack.c.h.b16 %v405
        %v493 = vunpack.c.l.b16 %v406
        %v494 = vunpack.c.l.b16 %v407
        %v495 = vunpack.c.h.b16 %v407
        %v496 = vunpack.c.l.b16 %v408
        %v497 = vunpack.c.l.b16 %v409
        %v498 = vunpack.c.h.b16 %v409
        %v499 = vunpack.c.l.b16 %v410
        %v500 = vunpack.c.l.b16 %v411
        %v501 = vunpack.c.h.b16 %v411
        %v502 = vunpack.c.l.b16 %v412
        %v503 = vunpack.c.l.b16 %v413
        %v504 = vunpack.c.h.b16 %v413
        %v505 = vunpack.c.l.b16 %v414
        %v506 = vunpack.c.l.b16 %v415
        %v507 = vunpack.c.h.b16 %v415
        %v508 = vunpack.c.l.b16 %v416
        %v509 = vunpack.c.l.b16 %v417
        %v510 = vunpack.c.h.b16 %v417
        %v511 = vunpack.c.l.b16 %v418
        %v512 = vunpack.c.l.b16 %v419
        %v513 = vunpack.c.h.b16 %v419
        %v514 = vunpack.c.l.b16 %v420
        %v515 = vunpack.c.l.b16 %v421
        %v516 = vunpack.c.h.b16 %v421
        %v517 = vunpack.c.l.b16 %v422
        %v518 = vunpack.c.l.b16 %v423
        %v519 = vunpack.c.h.b16 %v423
        %v520 = vunpack.c.l.b16 %v424
        %v521 = vunpack.c.l.b16 %v425
        %v522 = vunpack.c.h.b16 %v425
        %v523 = vunpack.c.l.b16 %v426
        %v524 = vpack.c.b16 %v479, %v476
        %v525 = vpack.c.b16 %v480, %v477
        %v526 = vpack.c.b16 %v481, %v478
        %v527 = vpack.c.b16 %v485, %v482
        %v528 = vpack.c.b16 %v486, %v483
        %v529 = vpack.c.b16 %v487, %v484
        %v530 = vpack.c.b16 %v491, %v488
        %v531 = vpack.c.b16 %v492, %v489
        %v532 = vpack.c.b16 %v493, %v490
        %v533 = vpack.c.b16 %v497, %v494
        %v534 = vpack.c.b16 %v498, %v495
        %v535 = vpack.c.b16 %v499, %v496
        %v536 = vpack.c.b16 %v503, %v500
        %v537 = vpack.c.b16 %v504, %v501
        %v538 = vpack.c.b16 %v505, %v502
        %v539 = vpack.c.b16 %v509, %v506
        %v540 = vpack.c.b16 %v510, %v507
        %v541 = vpack.c.b16 %v511, %v508
        %v542 = vpack.c.b16 %v515, %v512
        %v543 = vpack.c.b16 %v516, %v513
        %v544 = vpack.c.b16 %v517, %v514
        %v545 = vpack.c.b16 %v521, %v518
        %v546 = vpack.c.b16 %v522, %v519
        %v547 = vpack.c.b16 %v523, %v520
        %572 = vmatprep.subr.bf16.mxu0 %v546
        %573 = vmatpush1.bf16.msra.mxu0 %v545
        %574 = vmatprep.subr.bf16.mxu0 %v543
        %575 = vmatpush1.bf16.msra.mxu0 %v542
        %576 = vmatprep.subr.bf16.mxu0 %v540
        %577 = vmatpush1.bf16.msra.mxu0 %v539
        %578 = vmatprep.subr.bf16.mxu0 %v537
        %579 = vmatpush1.bf16.msra.mxu0 %v536
        %580 = vmatprep.subr.bf16.mxu0 %v534
        %581 = vmatpush1.bf16.msra.mxu0 %v533
        %582 = vmatprep.subr.bf16.mxu0 %v531
        %583 = vmatpush1.bf16.msra.mxu0 %v530
        %584 = vmatprep.subr.bf16.mxu0 %v528
        %585 = vmatpush1.bf16.msra.mxu0 %v527
        %586 = vmatprep.subr.bf16.mxu0 %v525
        %587 = vmatpush1.bf16.msra.mxu0 %v524
        %588 = vmatprep.subr.bf16.mxu0 0
        %589 = vmatpush2.bf16.msra.mxu0 0
        %590 = vmatprep.subr.bf16.mxu0 0
        %591 = vmatpush2.bf16.msra.mxu0 0
        %592 = vmatprep.subr.bf16.mxu0 0
        %593 = vmatpush2.bf16.msra.mxu0 0
        %594 = vmatprep.subr.bf16.mxu0 0
        %595 = vmatpush2.bf16.msra.mxu0 0
        %596 = vmatprep.subr.bf16.mxu0 0
        %597 = vmatpush2.bf16.msra.mxu0 0
        %598 = vmatprep.subr.bf16.mxu0 0
        %599 = vmatpush2.bf16.msra.mxu0 0
        %600 = vmatprep.subr.bf16.mxu0 0
        %601 = vmatpush2.bf16.msra.mxu0 0
        %602 = vmatprep.subr.bf16.mxu0 0
        %603 = vmatpush2.bf16.msra.mxu0 0
        %604 = vmatprep.mubr.bf16.mxu0 0
        %605 = vmatmul.mubr.bf16.gmra.mxu0 %v394
        %v606 = vpop.f32.mrf.mxu0
        %v607 = vadd.f32 %v432, %v606
        %v608 = vpop.f32.mrf.mxu0
        %v609 = vadd.f32 %v436, %v608
        %v610 = vpop.f32.mrf.mxu0
        %v611 = vpop.f32.mrf.mxu0
        %612 = vdwg.mxu0
        %613 = vmatprep.subr.bf16.mxu0 0
        %614 = vmatpush1.bf16.msra.mxu0 %v547
        %615 = vmatprep.subr.bf16.mxu0 0
        %616 = vmatpush1.bf16.msra.mxu0 %v544
        %617 = vmatprep.subr.bf16.mxu0 0
        %618 = vmatpush1.bf16.msra.mxu0 %v541
        %619 = vmatprep.subr.bf16.mxu0 0
        %620 = vmatpush1.bf16.msra.mxu0 %v538
        %621 = vmatprep.subr.bf16.mxu0 0
        %622 = vmatpush1.bf16.msra.mxu0 %v535
        %623 = vmatprep.subr.bf16.mxu0 0
        %624 = vmatpush1.bf16.msra.mxu0 %v532
        %625 = vmatprep.subr.bf16.mxu0 0
        %626 = vmatpush1.bf16.msra.mxu0 %v529
        %627 = vmatprep.subr.bf16.mxu0 0
        %628 = vmatpush1.bf16.msra.mxu0 %v526
        %629 = vmatprep.subr.bf16.mxu0 0
        %630 = vmatpush2.bf16.msra.mxu0 0
        %631 = vmatprep.subr.bf16.mxu0 0
        %632 = vmatpush2.bf16.msra.mxu0 0
        %633 = vmatprep.subr.bf16.mxu0 0
        %634 = vmatpush2.bf16.msra.mxu0 0
        %635 = vmatprep.subr.bf16.mxu0 0
        %636 = vmatpush2.bf16.msra.mxu0 0
        %637 = vmatprep.subr.bf16.mxu0 0
        %638 = vmatpush2.bf16.msra.mxu0 0
        %639 = vmatprep.subr.bf16.mxu0 0
        %640 = vmatpush2.bf16.msra.mxu0 0
        %641 = vmatprep.subr.bf16.mxu0 0
        %642 = vmatpush2.bf16.msra.mxu0 0
        %643 = vmatprep.subr.bf16.mxu0 0
        %644 = vmatpush2.bf16.msra.mxu0 0
        %645 = vmatprep.mubr.bf16.mxu0 0
        %646 = vmatmul.mubr.bf16.gmra.mxu0 %v394
        %v647 = vpop.f32.mrf.mxu0
        %v648 = vadd.f32 %v440, %v647
        %v649 = vpop.f32.mrf.mxu0
        %v650 = vpop.f32.mrf.mxu0
        %v651 = vpop.f32.mrf.mxu0
        %652 = vdwg.mxu0
        %v653 = vpack.c.bf16 %v607, %v607
        %v654 = vpack.c.bf16 %v609, %v609
        %v655 = vpack.c.bf16 %v648, %v648
        %v656 = vld [vmem:[%s331] sm:$0x1]
        %v658 = vlaneseq
        %v659 = vshrl.u32 %v658, 7
        %v660 = vsub.s32 0, %v659
        %v661 = vrot.slane %v656, %v660
        %663 = vmatprep.subr.bf16.mxu0 0
        %664 = vmatpush1.bf16.xpose.msra.mxu0 0
        %665 = vmatprep.subr.bf16.mxu0 0
        %666 = vmatpush1.bf16.xpose.msra.mxu0 0
        %667 = vmatprep.subr.bf16.mxu0 0
        %668 = vmatpush1.bf16.xpose.msra.mxu0 0
        %669 = vmatprep.subr.bf16.mxu0 0
        %670 = vmatpush1.bf16.xpose.msra.mxu0 0
        %671 = vmatprep.subr.bf16.mxu0 0
        %672 = vmatpush1.bf16.xpose.msra.mxu0 0
        %673 = vmatprep.subr.bf16.mxu0 0
        %674 = vmatpush1.bf16.xpose.msra.mxu0 0
        %675 = vmatprep.subr.bf16.mxu0 0
        %676 = vmatpush1.bf16.xpose.msra.mxu0 0
        %677 = vmatprep.subr.bf16.mxu0 0
        %678 = vmatpush1.bf16.xpose.msra.mxu0 %v654
        %679 = vmatprep.subr.bf16.mxu0 0
        %680 = vmatpush2.bf16.xpose.msra.mxu0 0
        %681 = vmatprep.subr.bf16.mxu0 0
        %682 = vmatpush2.bf16.xpose.msra.mxu0 0
        %683 = vmatprep.subr.bf16.mxu0 0
        %684 = vmatpush2.bf16.xpose.msra.mxu0 0
        %685 = vmatprep.subr.bf16.mxu0 0
        %686 = vmatpush2.bf16.xpose.msra.mxu0 0
        %687 = vmatprep.subr.bf16.mxu0 0
        %688 = vmatpush2.bf16.xpose.msra.mxu0 0
        %689 = vmatprep.subr.bf16.mxu0 0
        %690 = vmatpush2.bf16.xpose.msra.mxu0 0
        %691 = vmatprep.subr.bf16.mxu0 0
        %692 = vmatpush2.bf16.xpose.msra.mxu0 0
        %693 = vmatprep.subr.bf16.mxu0 0
        %694 = vmatpush2.bf16.xpose.msra.mxu0 0
        %695 = vmatprep.mubr.bf16.mxu0 0
        %696 = vmatmul.mubr.bf16.gmra.mxu0 %v653
        %v697 = vpop.f32.mrf.mxu0
        %v698 = vadd.f32 %v661, %v697
        %v699 = vpop.f32.mrf.mxu0
        %v700 = vpop.f32.mrf.mxu0
        %v701 = vpop.f32.mrf.mxu0
        %702 = vdwg.mxu0
        %vm703 = vcmask 64512
        %v704 = vsel %vm703, %v698, -inf
        %705 = vmax.xlane.f32.xlu0 %v704
        %v706 = vpop.xlane.xlu0 %705
        %v707 = vsub.f32 %v698, %v706
        %v708 = vmul.f32 %v707, 1.442695
        %v709 = vpow.pop %v708
        %v710 = vsel %vm703, %v709, 0.0
        %711 = vadd.xlane.f32.xlu0 %v710
        %v712 = vpop.xlane.xlu0 %711
        %v713 = vrcp.pop %v712
        %v714 = vmul.f32 %v709, %v713
        %v715 = vpack.c.bf16 %v714, %v714
        %v717 = vsel %vm703, %v715, 0
        %vm719 = vcmask 1043456
        %v721 = vsel %vm719, %v655, 0
        %723 = vmatprep.subr.bf16.mxu0 0
        %724 = vmatpush1.bf16.msra.mxu0 0
        %725 = vmatprep.subr.bf16.mxu0 0
        %726 = vmatpush1.bf16.msra.mxu0 0
        %727 = vmatprep.subr.bf16.mxu0 0
        %728 = vmatpush1.bf16.msra.mxu0 0
        %729 = vmatprep.subr.bf16.mxu0 0
        %730 = vmatpush1.bf16.msra.mxu0 0
        %731 = vmatprep.subr.bf16.mxu0 0
        %732 = vmatpush1.bf16.msra.mxu0 0
        %733 = vmatprep.subr.bf16.mxu0 0
        %734 = vmatpush1.bf16.msra.mxu0 0
        %735 = vmatprep.subr.bf16.mxu0 0
        %736 = vmatpush1.bf16.msra.mxu0 0
        %737 = vmatprep.subr.bf16.mxu0 0
        %738 = vmatpush1.bf16.msra.mxu0 %v721
        %739 = vmatprep.subr.bf16.mxu0 0
        %740 = vmatpush2.bf16.msra.mxu0 0
        %741 = vmatprep.subr.bf16.mxu0 0
        %742 = vmatpush2.bf16.msra.mxu0 0
        %743 = vmatprep.subr.bf16.mxu0 0
        %744 = vmatpush2.bf16.msra.mxu0 0
        %745 = vmatprep.subr.bf16.mxu0 0
        %746 = vmatpush2.bf16.msra.mxu0 0
        %747 = vmatprep.subr.bf16.mxu0 0
        %748 = vmatpush2.bf16.msra.mxu0 0
        %749 = vmatprep.subr.bf16.mxu0 0
        %750 = vmatpush2.bf16.msra.mxu0 0
        %751 = vmatprep.subr.bf16.mxu0 0
        %752 = vmatpush2.bf16.msra.mxu0 0
        %753 = vmatprep.subr.bf16.mxu0 0
        %754 = vmatpush2.bf16.msra.mxu0 0
        %755 = vmatprep.mubr.bf16.mxu0 0
        %756 = vmatmul.mubr.bf16.gmra.mxu0 %v717
        %v757 = vpop.f32.mrf.mxu0
        %v758 = vadd.f32 0.0, %v757
        %v759 = vpop.f32.mrf.mxu0
        %v760 = vpop.f32.mrf.mxu0
        %v761 = vpop.f32.mrf.mxu0
        %762 = vdwg.mxu0
        %v763 = vpack.c.bf16 %v758, %v758
        %v764 = vld [vmem:[#allocation7] sm:$0xf]
        %v765 = vld [vmem:[#allocation7 + $0x4] sm:$0xf]
        %v766 = vld [vmem:[#allocation7 + $0x8] sm:$0xf]
        %v767 = vld [vmem:[#allocation7 + $0xc] sm:$0xf]
        %v768 = vld [vmem:[#allocation7 + $0x10] sm:$0xf]
        %v769 = vld [vmem:[#allocation7 + $0x14] sm:$0xf]
        %v770 = vld [vmem:[#allocation7 + $0x18] sm:$0xf]
        %v771 = vld [vmem:[#allocation7 + $0x1c] sm:$0xf]
        %v772 = vld [vmem:[#allocation7 + $0x20] sm:$0xf]
        %v773 = vld [vmem:[#allocation7 + $0x24] sm:$0xf]
        %v774 = vld [vmem:[#allocation7 + $0x28] sm:$0xf]
        %v775 = vld [vmem:[#allocation7 + $0x2c] sm:$0xf]
        %v776 = vld [vmem:[#allocation7 + $0x30] sm:$0xf]
        %v777 = vld [vmem:[#allocation7 + $0x34] sm:$0xf]
        %v778 = vld [vmem:[#allocation7 + $0x38] sm:$0xf]
        %v779 = vld [vmem:[#allocation7 + $0x3c] sm:$0xf]
        %v780 = vld [vmem:[%s6] sm:$0x1]
        %v782 = vlaneseq
        %v783 = vshrl.u32 %v782, 7
        %v784 = vsub.s32 0, %v783
        %v785 = vrot.slane %v780, %v784
        %v803 = vunpack.c.l.b16 %v764
        %v804 = vunpack.c.l.b16 %v765
        %v805 = vunpack.c.l.b16 %v766
        %v806 = vunpack.c.l.b16 %v767
        %v807 = vunpack.c.l.b16 %v768
        %v808 = vunpack.c.l.b16 %v769
        %v809 = vunpack.c.l.b16 %v770
        %v810 = vunpack.c.l.b16 %v771
        %v811 = vunpack.c.l.b16 %v772
        %v812 = vunpack.c.l.b16 %v773
        %v813 = vunpack.c.l.b16 %v774
        %v814 = vunpack.c.l.b16 %v775
        %v815 = vunpack.c.l.b16 %v776
        %v816 = vunpack.c.l.b16 %v777
        %v817 = vunpack.c.l.b16 %v778
        %v818 = vunpack.c.l.b16 %v779
        %v819 = vpack.c.b16 %v804, %v803
        %v820 = vpack.c.b16 %v806, %v805
        %v821 = vpack.c.b16 %v808, %v807
        %v822 = vpack.c.b16 %v810, %v809
        %v823 = vpack.c.b16 %v812, %v811
        %v824 = vpack.c.b16 %v814, %v813
        %v825 = vpack.c.b16 %v816, %v815
        %v826 = vpack.c.b16 %v818, %v817
        %835 = vmatprep.subr.bf16.mxu0 0
        %836 = vmatpush1.bf16.msra.mxu0 %v826
        %837 = vmatprep.subr.bf16.mxu0 0
        %838 = vmatpush1.bf16.msra.mxu0 %v825
        %839 = vmatprep.subr.bf16.mxu0 0
        %840 = vmatpush1.bf16.msra.mxu0 %v824
        %841 = vmatprep.subr.bf16.mxu0 0
        %842 = vmatpush1.bf16.msra.mxu0 %v823
        %843 = vmatprep.subr.bf16.mxu0 0
        %844 = vmatpush1.bf16.msra.mxu0 %v822
        %845 = vmatprep.subr.bf16.mxu0 0
        %846 = vmatpush1.bf16.msra.mxu0 %v821
        %847 = vmatprep.subr.bf16.mxu0 0
        %848 = vmatpush1.bf16.msra.mxu0 %v820
        %849 = vmatprep.subr.bf16.mxu0 0
        %850 = vmatpush1.bf16.msra.mxu0 %v819
        %851 = vmatprep.subr.bf16.mxu0 0
        %852 = vmatpush2.bf16.msra.mxu0 0
        %853 = vmatprep.subr.bf16.mxu0 0
        %854 = vmatpush2.bf16.msra.mxu0 0
        %855 = vmatprep.subr.bf16.mxu0 0
        %856 = vmatpush2.bf16.msra.mxu0 0
        %857 = vmatprep.subr.bf16.mxu0 0
        %858 = vmatpush2.bf16.msra.mxu0 0
        %859 = vmatprep.subr.bf16.mxu0 0
        %860 = vmatpush2.bf16.msra.mxu0 0
        %861 = vmatprep.subr.bf16.mxu0 0
        %862 = vmatpush2.bf16.msra.mxu0 0
        %863 = vmatprep.subr.bf16.mxu0 0
        %864 = vmatpush2.bf16.msra.mxu0 0
        %865 = vmatprep.subr.bf16.mxu0 0
        %866 = vmatpush2.bf16.msra.mxu0 0
        %867 = vmatprep.mubr.bf16.mxu0 0
        %868 = vmatmul.mubr.bf16.gmra.mxu0 %v763
        %v869 = vpop.f32.mrf.mxu0
        %v870 = vadd.f32 %v785, %v869
        %v871 = vpop.f32.mrf.mxu0
        %v872 = vpop.f32.mrf.mxu0
        %v873 = vpop.f32.mrf.mxu0
        %874 = vdwg.mxu0
        %v875 = vld [vmem:[%s391] sm:$0xff]
        %877 = vset.pattern.permute.xlu0 0
        %878 = vperm.xlu0 %877, %v875
        %v879 = vpop.permute.xlu0 %878
        %v881 = vmul.f32 %v870, %v879
        %882 = vst [vmem:[%s376] sm:$0xff] %v881
        %vm883 = vcmask 60416
        %884 = vst.msk [vmem:[%s383] sm:$0xf] %vm883, %v715
        %s885 = sand.u32 %s200, 1
        %s886 = scalar_lea.sflag [#allocation4], %s885
        %s887 = sand.u32 %s200, 1
        %s888 = smul.addr %s887, 8
        %s889 = scalar_lea.vmem [#allocation8], %s888
        %s890 = sand.u32 %s226, 1
        %s891 = scalar_lea.sflag [#allocation10], %s890
        %s892 = sand.u32 %s226, 1
        %s893 = smul.addr %s892, 4
        %s894 = scalar_lea.vmem [#allocation9], %s893
        // Predicated region
        $region61: #{tpu_custom_call.1} parent=47 // pred_check
          %p895 = pneg %p210
        $region62: #{tpu_custom_call.1} parent=47 // pred_check_branch
          %897 = sbr.rel (%p895) target = $region64
        $region63: #{tpu_custom_call.1} parent=47 // pred_region
          %s899 = ssub.s32 128, 128
          %900 = vsyncadd %s886, %s899
          %s901 = smul.addr %s30, 128
          %s902 = scalar_lea.hbm %s7, %s901
          %s904 = sshll.u32 %s889, 4
          %s905 = int_to_ptr.vmem [resolvable:$true] %s904
          %907 = dma.vmem_to_hbm [thread:$0]  %s905, 128, %s902, %s886
        $region64: #{tpu_custom_call.1} parent=47 // pred_fallthru
          _
        // Predicated region
        $region65: #{tpu_custom_call.1} parent=47 // pred_check
          %p908 = pneg %p236
        $region66: #{tpu_custom_call.1} parent=47 // pred_check_branch
          %910 = sbr.rel (%p908) target = $region68
        $region67: #{tpu_custom_call.1} parent=47 // pred_region
          %s912 = ssub.s32 64, 64
          %913 = vsyncadd %s891, %s912
          %s914 = smul.addr %s30, 64
          %s915 = scalar_lea.hbm %s8, %s914
          %s917 = sshll.u32 %s894, 4
          %s918 = int_to_ptr.vmem [resolvable:$true] %s917
          %920 = dma.vmem_to_hbm [thread:$0]  %s918, 64, %s915, %s891
        $region68: #{tpu_custom_call.1} parent=47 // pred_fallthru
          _
      $region48: #{tpu_custom_call.1} parent=5 // pred_fallthru
        _
      %p921 = scmp.le.s32.totalorder 2, %s25
      // Predicated region
      $region69: #{tpu_custom_call.1} parent=5 // pred_check
        %p922 = pneg %p921
      $region70: #{tpu_custom_call.1} parent=5 // pred_check_branch
        %924 = sbr.rel (%p922) target = $region72
      $region71: #{tpu_custom_call.1} parent=5 // pred_region
        %s925 = ssub.s32 %s25, 2
        // Predicated region
        $region73: #{tpu_custom_call.1} parent=71 // pred_check
          %p926 = pneg %p216
        $region74: #{tpu_custom_call.1} parent=71 // pred_check_branch
          %928 = sbr.rel (%p926) target = $region76
        $region75: #{tpu_custom_call.1} parent=71 // pred_region
          %s929 = sand.u32 %s201, 1
          %s930 = scalar_lea.sflag [#allocation4], %s929
          %s931 = sand.u32 %s201, 1
          %s932 = smul.addr %s931, 8
          %s933 = scalar_lea.vmem [#allocation8], %s932
          %934 = dma.done %s930, 128
        $region76: #{tpu_custom_call.1} parent=71 // pred_fallthru
          _
        // Predicated region
        $region77: #{tpu_custom_call.1} parent=71 // pred_check
          %p935 = pneg %p242
        $region78: #{tpu_custom_call.1} parent=71 // pred_check_branch
          %937 = sbr.rel (%p935) target = $region80
        $region79: #{tpu_custom_call.1} parent=71 // pred_region
          %s938 = sand.u32 %s227, 1
          %s939 = scalar_lea.sflag [#allocation10], %s938
          %s940 = sand.u32 %s227, 1
          %s941 = smul.addr %s940, 4
          %s942 = scalar_lea.vmem [#allocation9], %s941
          %943 = dma.done %s939, 64
        $region80: #{tpu_custom_call.1} parent=71 // pred_fallthru
          _
      $region72: #{tpu_custom_call.1} parent=5 // pred_fallthru
        _
    $region6: #{tpu_custom_call.1} parent=1 // loop_footer
      %s29 = sadd.s32 1, %s25
    $region7: #{tpu_custom_call.1} parent=1 // loop_footer_branch
      %24 = sbr.rel target = $region3
    $region8: #{tpu_custom_call.1} parent=1 // loop_exit
      _
    %944 = vsyncpa [#allocation3], 1
    %s945 = scalar_lea.sflag [#allocation3], 1
    %946 = vsyncpa %s945, 1
    %947 = vsyncpa [#allocation6], 1
    %948 = vsyncpa [#allocation4], 1
    %s949 = scalar_lea.sflag [#allocation4], 1
    %950 = vsyncpa %s949, 1
    %951 = vsyncpa [#allocation10], 1
    %s952 = scalar_lea.sflag [#allocation10], 1
    %953 = vsyncpa %s952, 1

</llo_original>
